<compile_context>
chip_gen: v7x
topology: tpu7x:2x2x1
jax: 0.10.0
libtpu: 0.0.40
codegen_flags: <defaults>
</compile_context>

<pallas_src>
import functools

import jax
import jax.numpy as jnp
import numpy as np
from jax import lax
from jax.experimental import pallas as pl
from jax.experimental.pallas import tpu as pltpu


# ----------------------------- math helpers -----------------------------------

def _mish_exact(v):
    # Exact Mish; used outside the kernel (hoisted emb branch) and in the reference.
    return v * jnp.tanh(jax.nn.softplus(v))


def _mish_kernel(v):
    # Mish(x) = x * tanh(softplus(x)) = x * (s^2 - 1) / (s^2 + 1), s = 1 + e^x.
    # 1 exp + 1 approx reciprocal on the EUP instead of exp + log1p + tanh.
    vc = jnp.minimum(v, 20.0)                 # avoid overflow; Mish(x) ~= x for x > 20
    s = 1.0 + jnp.exp(vc)
    s2 = s * s
    y = v * (s2 - 1.0) * pl.reciprocal(s2 + 1.0, approx=True)
    return jnp.where(v > 20.0, v, y)


def _channel_layernorm(h, g, b, eps):
    # h: (W, C); normalize over channel (lane) dim, biased variance.
    # Two-pass (h - mean)^2 form avoids the E[x^2]-mean^2 cancellation risk.
    mean = jnp.mean(h, axis=-1, keepdims=True)
    d = h - mean
    var = jnp.mean(d * d, axis=-1, keepdims=True)
    return d * lax.rsqrt(var + eps) * g + b


def _conv3_matmul(xp, xc, xn, w_ref, b_ref, fuse_taps):
    # 3-tap conv as MXU matmul(s); bf16 operands, f32 accumulation.
    if fuse_taps:
        # Lane-aligned channels -> one fused (W, 3C) @ (3C, Cout) matmul.
        x3 = jnp.concatenate([xp, xc, xn], axis=-1)
        return jnp.dot(x3, w_ref[...], preferred_element_type=jnp.float32) + b_ref[...]
    # Otherwise three accumulating dots avoid the lane-misaligned concat relayout.
    h = jnp.dot(xp, w_ref[0], preferred_element_type=jnp.float32)
    h = h + jnp.dot(xc, w_ref[1], preferred_element_type=jnp.float32)
    h = h + jnp.dot(xn, w_ref[2], preferred_element_type=jnp.float32)
    return h + b_ref[...]


# ------------------------------- kernel ----------------------------------------

def _residual_block_kernel(body_ref, halo_ref, ebias_ref,
                           w1_ref, b1_ref, g1_ref, be1_ref,
                           w2_ref, b2_ref, g2_ref, be2_ref,
                           out_ref, win_ref,
                           *, eps, add_residual, tile_t, halo, fuse_taps):
    t = pl.program_id(1)
    nt = pl.num_programs(1)
    w = tile_t + 2 * halo                             # window rows (multiple of 8)

    # Assemble the halo'd window [top halo | body | bottom halo] in f32 scratch.
    # Halo rows were gathered with indices clamped to [0, T-1] in the wrapper, so
    # conv1's replicate padding at the global boundaries is already baked in.
    body_f32 = body_ref[0].astype(jnp.float32)        # (tile_t, Cin)
    hal_f32 = halo_ref[...][0, 0].astype(jnp.float32)  # (2*halo, Cin)
    win_ref[:halo, :] = hal_f32[:halo]
    win_ref[halo:halo + tile_t, :] = body_f32
    win_ref[halo + tile_t:w, :] = hal_f32[halo:]
    xb = win_ref[...]                                 # (W, Cin) f32

    # ---- conv1: +-1 time shifts via XLU rolls (the wrap-around rows 0 / W-1 are
    # never consumed); taps as bf16 MXU matmul(s) with f32 accumulation.
    xp = pltpu.roll(xb, shift=1, axis=0)              # xp[p] = xb[p-1]
    xn = pltpu.roll(xb, shift=w - 1, axis=0)          # xn[p] = xb[p+1]
    h = _conv3_matmul(xp.astype(jnp.bfloat16), xb.astype(jnp.bfloat16),
                      xn.astype(jnp.bfloat16), w1_ref, b1_ref, fuse_taps)

    h = _channel_layernorm(h, g1_ref[...], be1_ref[...], eps)
    h = _mish_kernel(h)
    h = h + ebias_ref[0]                              # hoisted emb bias, (1, Cout)

    # ---- conv2: replicate padding at the *global* sequence ends uses h[0]/h[T-1];
    # fix the single boundary tap row on the first/last tile with masked selects.
    hp = pltpu.roll(h, shift=1, axis=0)               # hp[p] = h[p-1]
    hn = pltpu.roll(h, shift=w - 1, axis=0)           # hn[p] = h[p+1]
    row = lax.broadcasted_iota(jnp.int32, (w, 1), 0)
    hp = jnp.where(jnp.logical_and(t == 0, row == halo), h, hp)
    hn = jnp.where(jnp.logical_and(t == nt - 1, row == halo + tile_t - 1), h, hn)
    h2 = _conv3_matmul(hp.astype(jnp.bfloat16), h.astype(jnp.bfloat16),
                       hn.astype(jnp.bfloat16), w2_ref, b2_ref, fuse_taps)

    h2 = h2[halo:halo + tile_t]                       # drop halo rows before epilogue
    h2 = _channel_layernorm(h2, g2_ref[...], be2_ref[...], eps)
    h2 = _mish_kernel(h2)
    if add_residual:
        h2 = h2 + body_f32
    out_ref[0] = h2.astype(out_ref.dtype)


# ------------------------------- wrapper ----------------------------------------

def residual_block_forward(x_ncl, emb, params, eps=1e-5, tile_t=None, fuse_taps=None):
    """x_ncl: (B, Cin, T) (PyTorch NCL layout), emb: (B, E)."""
    B, Cin, T = x_ncl.shape
    K, _, Cout = params["w1"].shape
    assert K == 3
    add_residual = (Cin == Cout)
    HALO = 4          # 2 rows/side needed; 4 keeps the window a sublane-tile multiple

    if tile_t is None:
        if T <= 512:
            tile_t = T
        else:
            cand = [d for d in range(512, 7, -8) if T % d == 0]
            tile_t = cand[0] if cand else T
        # Keep >= 2 grid steps so v7x megacore has work for both TensorCores.
        if B * (T // tile_t) < 2 and tile_t % 16 == 0:
            tile_t //= 2
    assert T % tile_t == 0 and (tile_t % 8 == 0 or tile_t == T), (T, tile_t)
    nt = T // tile_t
    win = tile_t + 2 * HALO

    if fuse_taps is None:
        fuse_taps = (Cin % 128 == 0) and (Cout % 128 == 0)

    act_dt = jnp.bfloat16     # bf16 activations on the HBM<->VMEM path

    # channels -> lanes, time -> sublanes.
    # TODO(synk): keep activations in (B, T, C) end-to-end in production so this
    # transpose (and the inverse one on the output) disappears.
    x_btc = jnp.transpose(x_ncl, (0, 2, 1)).astype(act_dt)          # (B, T, Cin)

    # Tiny per-tile halo slab (2*HALO rows per tile, ~HALO/tile_t of the input).
    # Clamping the gather indices bakes conv1's replicate padding in; this replaces
    # the previous full (B, T+4, C) padded-copy materialization.
    offs = np.concatenate([np.arange(-HALO, 0), np.arange(tile_t, tile_t + HALO)])
    idx = np.clip(np.arange(nt)[:, None] * tile_t + offs[None, :], 0, T - 1)
    halo = x_btc[:, idx.reshape(-1), :].reshape(B, nt, 2 * HALO, Cin)

    # Embedding branch hoisted out of the kernel: one (B,E)x(E,Cout) matmul in XLA.
    e = _mish_exact(emb.astype(jnp.float32))
    emb_bias = (e @ params["emb_w"] + params["emb_b"]).reshape(B, 1, Cout)

    if fuse_taps:
        w1 = params["w1"].reshape(3 * Cin, Cout).astype(act_dt)
        w2 = params["w2"].reshape(3 * Cout, Cout).astype(act_dt)
        w1_spec = pl.BlockSpec((3 * Cin, Cout), lambda b, t: (0, 0))
        w2_spec = pl.BlockSpec((3 * Cout, Cout), lambda b, t: (0, 0))
    else:
        w1 = params["w1"].astype(act_dt)
        w2 = params["w2"].astype(act_dt)
        w1_spec = pl.BlockSpec((3, Cin, Cout), lambda b, t: (0, 0, 0))
        w2_spec = pl.BlockSpec((3, Cout, Cout), lambda b, t: (0, 0, 0))

    def vec_spec(c):
        return pl.BlockSpec((1, c), lambda b, t: (0, 0))

    kernel = functools.partial(_residual_block_kernel, eps=eps,
                               add_residual=add_residual, tile_t=tile_t,
                               halo=HALO, fuse_taps=fuse_taps)

    # VMEM budget: double-buffered ins/outs + window scratch + rough in-kernel
    # temporaries; capped at 48 MiB so it is safe for v7x's 64 MiB VMEM
    # (v5e/v6e have ample headroom at the same tile).
    est = (2 * (tile_t + 2 * HALO) * Cin * 2            # body + halo, 2 bufs, bf16
           + 2 * tile_t * Cout * 2                       # out, 2 bufs, bf16
           + win * Cin * 4                               # window scratch, f32
           + win * (3 * Cin * 2 + 4 * Cout * 4 + 3 * Cout * 2)   # temporaries
           + (3 * Cin * Cout + 3 * Cout * Cout) * 2 + 8 * Cout * 4)
    vmem_limit = int(min(48 * 1024 * 1024, max(32 * 1024 * 1024, 4 * est)))

    out_btc = pl.pallas_call(
        kernel,
        out_shape=jax.ShapeDtypeStruct((B, T, Cout), act_dt),
        grid=(B, nt),
        in_specs=[
            pl.BlockSpec((1, tile_t, Cin), lambda b, t: (b, t, 0)),          # body tile
            pl.BlockSpec((1, 1, 2 * HALO, Cin), lambda b, t: (b, t, 0, 0)),  # halo rows
            pl.BlockSpec((1, 1, Cout), lambda b, t: (b, 0, 0)),              # emb bias
            w1_spec, vec_spec(Cout), vec_spec(Cout), vec_spec(Cout),         # w1,b1,g1,be1
            w2_spec, vec_spec(Cout), vec_spec(Cout), vec_spec(Cout),         # w2,b2,g2,be2
        ],
        out_specs=pl.BlockSpec((1, tile_t, Cout), lambda b, t: (b, t, 0)),
        scratch_shapes=[pltpu.VMEM((win, Cin), jnp.float32)],                # halo'd window
        compiler_params=pltpu.CompilerParams(
            dimension_semantics=("parallel", "parallel"),
            vmem_limit_bytes=vmem_limit),
    )(x_btc, halo, emb_bias,
      w1, params["b1"], params["g1"], params["be1"],
      w2, params["b2"], params["g2"], params["be2"])

    # Back to NCL; the cast to the caller's dtype rides the transpose.
    return jnp.transpose(out_btc, (0, 2, 1)).astype(x_ncl.dtype)


# ------------------------- f32 reference & init ---------------------------------

def _ref_forward(x_ncl, emb, params, eps=1e-5):
    """Pure-JAX f32 reference (module semantics, batched)."""
    x = jnp.transpose(x_ncl, (0, 2, 1)).astype(jnp.float32)
    Cin = x.shape[-1]
    Cout = params["w1"].shape[-1]

    def conv(h, w, b):
        hp = jnp.concatenate([h[:, :1], h[:, :-1]], axis=1)
        hn = jnp.concatenate([h[:, 1:], h[:, -1:]], axis=1)
        return (jnp.einsum("btc,cd->btd", hp, w[0])
                + jnp.einsum("btc,cd->btd", h, w[1])
                + jnp.einsum("btc,cd->btd", hn, w[2]) + b)

    def ln(h, g, b):
        m = jnp.mean(h, axis=-1, keepdims=True)
        v = jnp.mean((h - m) ** 2, axis=-1, keepdims=True)
        return (h - m) / jnp.sqrt(v + eps) * g + b

    h = conv(x, params["w1"], params["b1"])
    h = _mish_exact(ln(h, params["g1"], params["be1"]))
    e = _mish_exact(emb.astype(jnp.float32)) @ params["emb_w"] + params["emb_b"]
    h = h + e[:, None, :]
    h = conv(h, params["w2"], params["b2"])
    h = _mish_exact(ln(h, params["g2"], params["be2"]))
    if Cin == Cout:
        h = h + x
    return jnp.transpose(h, (0, 2, 1))


def _init_params(key, cin, cout, emb_dim, k=3):
    ks = jax.random.split(key, 8)
    s = 0.2
    return {
        # conv weights stored as (K, Cin, Cout) = transpose of torch (Cout, Cin, K)
        "w1": s * jax.random.normal(ks[0], (k, cin, cout), jnp.float32),
        "b1": s * jax.random.normal(ks[1], (1, cout), jnp.float32),
        "g1": 1.0 + 0.1 * jax.random.normal(ks[2], (1, cout), jnp.float32),
        "be1": 0.1 * jax.random.normal(ks[3], (1, cout), jnp.float32),
        "w2": s * jax.random.normal(ks[4], (k, cout, cout), jnp.float32),
        "b2": s * jax.random.normal(ks[5], (1, cout), jnp.float32),
        "g2": 1.0 + 0.1 * jax.random.normal(ks[6], (1, cout), jnp.float32),
        "be2": 0.1 * jax.random.normal(ks[7], (1, cout), jnp.float32),
        "emb_w": s * jax.random.normal(jax.random.fold_in(key, 100),
                                       (emb_dim, cout), jnp.float32),
        "emb_b": s * jax.random.normal(jax.random.fold_in(key, 101),
                                       (1, cout), jnp.float32),
    }


if __name__ == "__main__":
    key = jax.random.PRNGKey(0)

    cases = [
        # Cin == Cout (residual path), single time tile, per-tap conv path.
        dict(B=2, Cin=8, Cout=8, T=16, E=32, tile_t=16, fuse_taps=None),
        # Cin != Cout, multi-tile T (halo / boundary handling), fused-concat path.
        dict(B=2, Cin=8, Cout=16, T=64, E=32, tile_t=32, fuse_taps=True),
        # Lane-dense channels (C=128): auto-selects the fused MXU path, default tile.
        dict(B=2, Cin=128, Cout=128, T=64, E=32, tile_t=None, fuse_taps=None),
    ]
    for i, c in enumerate(cases):
        kx, ke, kp = jax.random.split(jax.random.fold_in(key, i), 3)
        x = jax.random.normal(kx, (c["B"], c["Cin"], c["T"]), jnp.float32)
        emb = jax.random.normal(ke, (c["B"], c["E"]), jnp.float32)
        params = _init_params(kp, c["Cin"], c["Cout"], c["E"])

        out = jax.block_until_ready(
            residual_block_forward(x, emb, params, tile_t=c["tile_t"],
                                   fuse_taps=c["fuse_taps"]))
        ref = jax.block_until_ready(_ref_forward(x, emb, params))
        # Tolerance reflects bf16 activations/weights + approx reciprocal in the
        # kernel vs the exact f32 reference (LayerNorm stats / accumulation stay f32).
        np.testing.assert_allclose(np.asarray(out, dtype=np.float32),
                                   np.asarray(ref), rtol=5e-2, atol=1e-1)

    print("KERNEL_OK")
</pallas_src>

<mosaic_0001>
module attributes {stable_mosaic.version = 11 : i64} {
  func.func @_residual_block_kernel(%arg0: i32, %arg1: i32, %arg2: memref<1x16x8xbf16, #tpu.memory_space<vmem>>, %arg3: memref<1x1x8x8xbf16, #tpu.memory_space<vmem>>, %arg4: memref<1x1x8xf32, #tpu.memory_space<vmem>>, %arg5: memref<3x8x8xbf16, #tpu.memory_space<vmem>>, %arg6: memref<1x8xf32, #tpu.memory_space<vmem>>, %arg7: memref<1x8xf32, #tpu.memory_space<vmem>>, %arg8: memref<1x8xf32, #tpu.memory_space<vmem>>, %arg9: memref<3x8x8xbf16, #tpu.memory_space<vmem>>, %arg10: memref<1x8xf32, #tpu.memory_space<vmem>>, %arg11: memref<1x8xf32, #tpu.memory_space<vmem>>, %arg12: memref<1x8xf32, #tpu.memory_space<vmem>>, %arg13: memref<1x16x8xbf16, #tpu.memory_space<vmem>>, %arg14: memref<24x8xf32, #tpu.memory_space<vmem>>) attributes {dimension_semantics = [#tpu.dimension_semantics<parallel>, #tpu.dimension_semantics<parallel>], iteration_bounds = array<i64: 2, 1>, scalar_prefetch = 0 : i64, scratch_operands = 1 : i64, tpu.core_type = #tpu.core_type<tc>, window_params = [{transform_indices = @transform_0, window_bounds = array<i64: 1, 16, 8>}, {transform_indices = @transform_1, window_bounds = array<i64: 1, 1, 8, 8>}, {transform_indices = @transform_2, window_bounds = array<i64: 1, 1, 8>}, {pipeline_mode = #tpu.pipeline_mode<synchronous>, transform_indices = @transform_3, window_bounds = array<i64: 3, 8, 8>}, {pipeline_mode = #tpu.pipeline_mode<synchronous>, transform_indices = @transform_4, window_bounds = array<i64: 1, 8>}, {pipeline_mode = #tpu.pipeline_mode<synchronous>, transform_indices = @transform_5, window_bounds = array<i64: 1, 8>}, {pipeline_mode = #tpu.pipeline_mode<synchronous>, transform_indices = @transform_6, window_bounds = array<i64: 1, 8>}, {pipeline_mode = #tpu.pipeline_mode<synchronous>, transform_indices = @transform_7, window_bounds = array<i64: 3, 8, 8>}, {pipeline_mode = #tpu.pipeline_mode<synchronous>, transform_indices = @transform_8, window_bounds = array<i64: 1, 8>}, {pipeline_mode = #tpu.pipeline_mode<synchronous>, transform_indices = @transform_9, window_bounds = array<i64: 1, 8>}, {pipeline_mode = #tpu.pipeline_mode<synchronous>, transform_indices = @transform_10, window_bounds = array<i64: 1, 8>}, {transform_indices = @transform_11, window_bounds = array<i64: 1, 16, 8>}]} {
    %c0 = arith.constant 0 : index
    %c0_0 = arith.constant 0 : index
    %c0_1 = arith.constant 0 : index
    %0 = vector.load %arg2[%c0, %c0_0, %c0_1] : memref<1x16x8xbf16, #tpu.memory_space<vmem>>, vector<1x16x8xbf16>
    %1 = vector.shape_cast %0 : vector<1x16x8xbf16> to vector<16x8xbf16>
    %2 = arith.extf %1 : vector<16x8xbf16> to vector<16x8xf32>
    %c0_2 = arith.constant 0 : index
    %c0_3 = arith.constant 0 : index
    %c0_4 = arith.constant 0 : index
    %c0_5 = arith.constant 0 : index
    %3 = vector.load %arg3[%c0_2, %c0_3, %c0_4, %c0_5] : memref<1x1x8x8xbf16, #tpu.memory_space<vmem>>, vector<1x1x8x8xbf16>
    %4 = vector.shape_cast %3 : vector<1x1x8x8xbf16> to vector<8x8xbf16>
    %5 = arith.extf %4 : vector<8x8xbf16> to vector<8x8xf32>
    %6 = vector.extract_strided_slice %5 {offsets = [0, 0], sizes = [4, 8], strides = [1, 1]} : vector<8x8xf32> to vector<4x8xf32>
    %c0_6 = arith.constant 0 : index
    %c0_7 = arith.constant 0 : index
    %7 = vector.load %arg14[%c0_6, %c0_7] : memref<24x8xf32, #tpu.memory_space<vmem>>, vector<4x8xf32>
    tpu.vector_store %arg14[%c0_6, %c0_7], %6 {strides = array<i32>} : memref<24x8xf32, #tpu.memory_space<vmem>>, vector<4x8xf32>,
    %c4 = arith.constant 4 : index
    %c0_8 = arith.constant 0 : index
    %8 = vector.load %arg14[%c4, %c0_8] : memref<24x8xf32, #tpu.memory_space<vmem>>, vector<16x8xf32>
    tpu.vector_store %arg14[%c4, %c0_8], %2 {strides = array<i32>} : memref<24x8xf32, #tpu.memory_space<vmem>>, vector<16x8xf32>,
    %9 = vector.extract_strided_slice %5 {offsets = [4, 0], sizes = [4, 8], strides = [1, 1]} : vector<8x8xf32> to vector<4x8xf32>
    %c20 = arith.constant 20 : index
    %c0_9 = arith.constant 0 : index
    %10 = vector.load %arg14[%c20, %c0_9] : memref<24x8xf32, #tpu.memory_space<vmem>>, vector<4x8xf32>
    tpu.vector_store %arg14[%c20, %c0_9], %9 {strides = array<i32>} : memref<24x8xf32, #tpu.memory_space<vmem>>, vector<4x8xf32>,
    %c0_10 = arith.constant 0 : index
    %c0_11 = arith.constant 0 : index
    %11 = vector.load %arg14[%c0_10, %c0_11] : memref<24x8xf32, #tpu.memory_space<vmem>>, vector<24x8xf32>
    %c1_i32 = arith.constant 1 : i32
    %12 = tpu.dynamic_rotate %11 by %c1_i32 dim 0 : vector<24x8xf32>, i32 -> vector<24x8xf32>
    %c23_i32 = arith.constant 23 : i32
    %13 = tpu.dynamic_rotate %11 by %c23_i32 dim 0 : vector<24x8xf32>, i32 -> vector<24x8xf32>
    %14 = arith.truncf %12 : vector<24x8xf32> to vector<24x8xbf16>
    %15 = arith.truncf %11 : vector<24x8xf32> to vector<24x8xbf16>
    %16 = arith.truncf %13 : vector<24x8xf32> to vector<24x8xbf16>
    %c0_12 = arith.constant 0 : index
    %c0_13 = arith.constant 0 : index
    %c0_14 = arith.constant 0 : index
    %17 = vector.load %arg5[%c0_12, %c0_13, %c0_14] : memref<3x8x8xbf16, #tpu.memory_space<vmem>>, vector<1x8x8xbf16>
    %18 = vector.shape_cast %17 : vector<1x8x8xbf16> to vector<8x8xbf16>
    %cst = arith.constant dense<0.000000e+00> : vector<24x8xf32>
    %19 = tpu.matmul %14, %18, %cst {dimension_numbers = #tpu.dot_dimension_numbers<[1], [0], [0], [1], [0, 0, 1, 1], [], []>} : vector<24x8xbf16>, vector<8x8xbf16>, vector<24x8xf32> -> vector<24x8xf32>
    %c1 = arith.constant 1 : index
    %c0_15 = arith.constant 0 : index
    %c0_16 = arith.constant 0 : index
    %20 = vector.load %arg5[%c1, %c0_15, %c0_16] : memref<3x8x8xbf16, #tpu.memory_space<vmem>>, vector<1x8x8xbf16>
    %21 = vector.shape_cast %20 : vector<1x8x8xbf16> to vector<8x8xbf16>
    %cst_17 = arith.constant dense<0.000000e+00> : vector<24x8xf32>
    %22 = tpu.matmul %15, %21, %cst_17 {dimension_numbers = #tpu.dot_dimension_numbers<[1], [0], [0], [1], [0, 0, 1, 1], [], []>} : vector<24x8xbf16>, vector<8x8xbf16>, vector<24x8xf32> -> vector<24x8xf32>
    %23 = arith.addf %19, %22 : vector<24x8xf32>
    %c2 = arith.constant 2 : index
    %c0_18 = arith.constant 0 : index
    %c0_19 = arith.constant 0 : index
    %24 = vector.load %arg5[%c2, %c0_18, %c0_19] : memref<3x8x8xbf16, #tpu.memory_space<vmem>>, vector<1x8x8xbf16>
    %25 = vector.shape_cast %24 : vector<1x8x8xbf16> to vector<8x8xbf16>
    %cst_20 = arith.constant dense<0.000000e+00> : vector<24x8xf32>
    %26 = tpu.matmul %16, %25, %cst_20 {dimension_numbers = #tpu.dot_dimension_numbers<[1], [0], [0], [1], [0, 0, 1, 1], [], []>} : vector<24x8xbf16>, vector<8x8xbf16>, vector<24x8xf32> -> vector<24x8xf32>
    %27 = arith.addf %23, %26 : vector<24x8xf32>
    %c0_21 = arith.constant 0 : index
    %c0_22 = arith.constant 0 : index
    %28 = vector.load %arg6[%c0_21, %c0_22] : memref<1x8xf32, #tpu.memory_space<vmem>>, vector<1x8xf32>
    %29 = vector.broadcast %28 : vector<1x8xf32> to vector<24x8xf32>
    %30 = arith.addf %27, %29 : vector<24x8xf32>
    %c0_23 = arith.constant 0 : index
    %c0_24 = arith.constant 0 : index
    %31 = vector.load %arg7[%c0_23, %c0_24] : memref<1x8xf32, #tpu.memory_space<vmem>>, vector<1x8xf32>
    %c0_25 = arith.constant 0 : index
    %c0_26 = arith.constant 0 : index
    %32 = vector.load %arg8[%c0_25, %c0_26] : memref<1x8xf32, #tpu.memory_space<vmem>>, vector<1x8xf32>
    %cst_27 = arith.constant dense<0.000000e+00> : vector<24xf32>
    %33 = vector.multi_reduction <add>, %30, %cst_27 [1] : vector<24x8xf32> to vector<24xf32>
    %34 = vector.shape_cast %33 : vector<24xf32> to vector<24x1xf32>
    %cst_28 = arith.constant 8.000000e+00 : f32
    %35 = vector.broadcast %cst_28 : f32 to vector<24x1xf32>
    %36 = arith.divf %34, %35 : vector<24x1xf32>
    %37 = vector.broadcast %36 : vector<24x1xf32> to vector<24x8xf32>
    %38 = arith.subf %30, %37 : vector<24x8xf32>
    %39 = arith.mulf %38, %38 : vector<24x8xf32>
    %cst_29 = arith.constant dense<0.000000e+00> : vector<24xf32>
    %40 = vector.multi_reduction <add>, %39, %cst_29 [1] : vector<24x8xf32> to vector<24xf32>
    %41 = vector.shape_cast %40 : vector<24xf32> to vector<24x1xf32>
    %cst_30 = arith.constant 8.000000e+00 : f32
    %42 = vector.broadcast %cst_30 : f32 to vector<24x1xf32>
    %43 = arith.divf %41, %42 : vector<24x1xf32>
    %cst_31 = arith.constant 9.99999974E-6 : f32
    %44 = vector.broadcast %cst_31 : f32 to vector<24x1xf32>
    %45 = arith.addf %43, %44 : vector<24x1xf32>
    %46 = math.rsqrt %45 : vector<24x1xf32>
    %47 = vector.broadcast %46 : vector<24x1xf32> to vector<24x8xf32>
    %48 = arith.mulf %38, %47 : vector<24x8xf32>
    %49 = vector.broadcast %31 : vector<1x8xf32> to vector<24x8xf32>
    %50 = arith.mulf %48, %49 : vector<24x8xf32>
    %51 = vector.broadcast %32 : vector<1x8xf32> to vector<24x8xf32>
    %52 = arith.addf %50, %51 : vector<24x8xf32>
    %cst_32 = arith.constant 2.000000e+01 : f32
    %53 = vector.broadcast %cst_32 : f32 to vector<24x8xf32>
    %54 = arith.minimumf %52, %53 : vector<24x8xf32>
    %55 = math.exp %54 : vector<24x8xf32>
    %cst_33 = arith.constant 1.000000e+00 : f32
    %56 = vector.broadcast %cst_33 : f32 to vector<24x8xf32>
    %57 = arith.addf %56, %55 : vector<24x8xf32>
    %58 = arith.mulf %57, %57 : vector<24x8xf32>
    %cst_34 = arith.constant 1.000000e+00 : f32
    %59 = vector.broadcast %cst_34 : f32 to vector<24x8xf32>
    %60 = arith.subf %58, %59 : vector<24x8xf32>
    %61 = arith.mulf %52, %60 : vector<24x8xf32>
    %cst_35 = arith.constant 1.000000e+00 : f32
    %62 = vector.broadcast %cst_35 : f32 to vector<24x8xf32>
    %63 = arith.addf %58, %62 : vector<24x8xf32>
    %64 = tpu.reciprocal %63 {approx = true} : vector<24x8xf32> -> vector<24x8xf32>
    %65 = arith.mulf %61, %64 : vector<24x8xf32>
    %cst_36 = arith.constant 2.000000e+01 : f32
    %66 = vector.broadcast %cst_36 : f32 to vector<24x8xf32>
    %67 = arith.cmpf ogt, %52, %66 : vector<24x8xf32>
    %68 = arith.select %67, %52, %65 : vector<24x8xi1>, vector<24x8xf32>
    %c0_37 = arith.constant 0 : index
    %c0_38 = arith.constant 0 : index
    %c0_39 = arith.constant 0 : index
    %69 = vector.load %arg4[%c0_37, %c0_38, %c0_39] : memref<1x1x8xf32, #tpu.memory_space<vmem>>, vector<1x1x8xf32>
    %70 = vector.shape_cast %69 : vector<1x1x8xf32> to vector<1x8xf32>
    %71 = vector.broadcast %70 : vector<1x8xf32> to vector<24x8xf32>
    %72 = arith.addf %68, %71 : vector<24x8xf32>
    %c1_i32_40 = arith.constant 1 : i32
    %73 = tpu.dynamic_rotate %72 by %c1_i32_40 dim 0 : vector<24x8xf32>, i32 -> vector<24x8xf32>
    %c23_i32_41 = arith.constant 23 : i32
    %74 = tpu.dynamic_rotate %72 by %c23_i32_41 dim 0 : vector<24x8xf32>, i32 -> vector<24x8xf32>
    %75 = tpu.iota {dimensions = array<i32: 0>} : vector<24x1xi32>
    %c0_i32 = arith.constant 0 : i32
    %76 = arith.cmpi eq, %arg1, %c0_i32 : i32
    %c4_i32 = arith.constant 4 : i32
    %77 = vector.broadcast %c4_i32 : i32 to vector<24x1xi32>
    %78 = arith.cmpi eq, %75, %77 : vector<24x1xi32>
    %79 = vector.broadcast %76 : i1 to vector<24x1xi1>
    %80 = arith.andi %79, %78 : vector<24x1xi1>
    %81 = vector.shape_cast %80 : vector<24x1xi1> to vector<24x1xi1>
    %82 = vector.broadcast %81 : vector<24x1xi1> to vector<24x8xi1>
    %83 = arith.select %82, %72, %73 : vector<24x8xi1>, vector<24x8xf32>
    %c0_i32_42 = arith.constant 0 : i32
    %84 = arith.cmpi eq, %arg1, %c0_i32_42 : i32
    %c19_i32 = arith.constant 19 : i32
    %85 = vector.broadcast %c19_i32 : i32 to vector<24x1xi32>
    %86 = arith.cmpi eq, %75, %85 : vector<24x1xi32>
    %87 = vector.broadcast %84 : i1 to vector<24x1xi1>
    %88 = arith.andi %87, %86 : vector<24x1xi1>
    %89 = vector.shape_cast %88 : vector<24x1xi1> to vector<24x1xi1>
    %90 = vector.broadcast %89 : vector<24x1xi1> to vector<24x8xi1>
    %91 = arith.select %90, %72, %74 : vector<24x8xi1>, vector<24x8xf32>
    %92 = arith.truncf %83 : vector<24x8xf32> to vector<24x8xbf16>
    %93 = arith.truncf %72 : vector<24x8xf32> to vector<24x8xbf16>
    %94 = arith.truncf %91 : vector<24x8xf32> to vector<24x8xbf16>
    %c0_43 = arith.constant 0 : index
    %c0_44 = arith.constant 0 : index
    %c0_45 = arith.constant 0 : index
    %95 = vector.load %arg9[%c0_43, %c0_44, %c0_45] : memref<3x8x8xbf16, #tpu.memory_space<vmem>>, vector<1x8x8xbf16>
    %96 = vector.shape_cast %95 : vector<1x8x8xbf16> to vector<8x8xbf16>
    %cst_46 = arith.constant dense<0.000000e+00> : vector<24x8xf32>
    %97 = tpu.matmul %92, %96, %cst_46 {dimension_numbers = #tpu.dot_dimension_numbers<[1], [0], [0], [1], [0, 0, 1, 1], [], []>} : vector<24x8xbf16>, vector<8x8xbf16>, vector<24x8xf32> -> vector<24x8xf32>
    %c1_47 = arith.constant 1 : index
    %c0_48 = arith.constant 0 : index
    %c0_49 = arith.constant 0 : index
    %98 = vector.load %arg9[%c1_47, %c0_48, %c0_49] : memref<3x8x8xbf16, #tpu.memory_space<vmem>>, vector<1x8x8xbf16>
    %99 = vector.shape_cast %98 : vector<1x8x8xbf16> to vector<8x8xbf16>
    %cst_50 = arith.constant dense<0.000000e+00> : vector<24x8xf32>
    %100 = tpu.matmul %93, %99, %cst_50 {dimension_numbers = #tpu.dot_dimension_numbers<[1], [0], [0], [1], [0, 0, 1, 1], [], []>} : vector<24x8xbf16>, vector<8x8xbf16>, vector<24x8xf32> -> vector<24x8xf32>
    %101 = arith.addf %97, %100 : vector<24x8xf32>
    %c2_51 = arith.constant 2 : index
    %c0_52 = arith.constant 0 : index
    %c0_53 = arith.constant 0 : index
    %102 = vector.load %arg9[%c2_51, %c0_52, %c0_53] : memref<3x8x8xbf16, #tpu.memory_space<vmem>>, vector<1x8x8xbf16>
    %103 = vector.shape_cast %102 : vector<1x8x8xbf16> to vector<8x8xbf16>
    %cst_54 = arith.constant dense<0.000000e+00> : vector<24x8xf32>
    %104 = tpu.matmul %94, %103, %cst_54 {dimension_numbers = #tpu.dot_dimension_numbers<[1], [0], [0], [1], [0, 0, 1, 1], [], []>} : vector<24x8xbf16>, vector<8x8xbf16>, vector<24x8xf32> -> vector<24x8xf32>
    %105 = arith.addf %101, %104 : vector<24x8xf32>
    %c0_55 = arith.constant 0 : index
    %c0_56 = arith.constant 0 : index
    %106 = vector.load %arg10[%c0_55, %c0_56] : memref<1x8xf32, #tpu.memory_space<vmem>>, vector<1x8xf32>
    %107 = vector.broadcast %106 : vector<1x8xf32> to vector<24x8xf32>
    %108 = arith.addf %105, %107 : vector<24x8xf32>
    %109 = vector.extract_strided_slice %108 {offsets = [4, 0], sizes = [16, 8], strides = [1, 1]} : vector<24x8xf32> to vector<16x8xf32>
    %c0_57 = arith.constant 0 : index
    %c0_58 = arith.constant 0 : index
    %110 = vector.load %arg11[%c0_57, %c0_58] : memref<1x8xf32, #tpu.memory_space<vmem>>, vector<1x8xf32>
    %c0_59 = arith.constant 0 : index
    %c0_60 = arith.constant 0 : index
    %111 = vector.load %arg12[%c0_59, %c0_60] : memref<1x8xf32, #tpu.memory_space<vmem>>, vector<1x8xf32>
    %cst_61 = arith.constant dense<0.000000e+00> : vector<16xf32>
    %112 = vector.multi_reduction <add>, %109, %cst_61 [1] : vector<16x8xf32> to vector<16xf32>
    %113 = vector.shape_cast %112 : vector<16xf32> to vector<16x1xf32>
    %cst_62 = arith.constant 8.000000e+00 : f32
    %114 = vector.broadcast %cst_62 : f32 to vector<16x1xf32>
    %115 = arith.divf %113, %114 : vector<16x1xf32>
    %116 = vector.broadcast %115 : vector<16x1xf32> to vector<16x8xf32>
    %117 = arith.subf %109, %116 : vector<16x8xf32>
    %118 = arith.mulf %117, %117 : vector<16x8xf32>
    %cst_63 = arith.constant dense<0.000000e+00> : vector<16xf32>
    %119 = vector.multi_reduction <add>, %118, %cst_63 [1] : vector<16x8xf32> to vector<16xf32>
    %120 = vector.shape_cast %119 : vector<16xf32> to vector<16x1xf32>
    %cst_64 = arith.constant 8.000000e+00 : f32
    %121 = vector.broadcast %cst_64 : f32 to vector<16x1xf32>
    %122 = arith.divf %120, %121 : vector<16x1xf32>
    %cst_65 = arith.constant 9.99999974E-6 : f32
    %123 = vector.broadcast %cst_65 : f32 to vector<16x1xf32>
    %124 = arith.addf %122, %123 : vector<16x1xf32>
    %125 = math.rsqrt %124 : vector<16x1xf32>
    %126 = vector.broadcast %125 : vector<16x1xf32> to vector<16x8xf32>
    %127 = arith.mulf %117, %126 : vector<16x8xf32>
    %128 = vector.broadcast %110 : vector<1x8xf32> to vector<16x8xf32>
    %129 = arith.mulf %127, %128 : vector<16x8xf32>
    %130 = vector.broadcast %111 : vector<1x8xf32> to vector<16x8xf32>
    %131 = arith.addf %129, %130 : vector<16x8xf32>
    %cst_66 = arith.constant 2.000000e+01 : f32
    %132 = vector.broadcast %cst_66 : f32 to vector<16x8xf32>
    %133 = arith.minimumf %131, %132 : vector<16x8xf32>
    %134 = math.exp %133 : vector<16x8xf32>
    %cst_67 = arith.constant 1.000000e+00 : f32
    %135 = vector.broadcast %cst_67 : f32 to vector<16x8xf32>
    %136 = arith.addf %135, %134 : vector<16x8xf32>
    %137 = arith.mulf %136, %136 : vector<16x8xf32>
    %cst_68 = arith.constant 1.000000e+00 : f32
    %138 = vector.broadcast %cst_68 : f32 to vector<16x8xf32>
    %139 = arith.subf %137, %138 : vector<16x8xf32>
    %140 = arith.mulf %131, %139 : vector<16x8xf32>
    %cst_69 = arith.constant 1.000000e+00 : f32
    %141 = vector.broadcast %cst_69 : f32 to vector<16x8xf32>
    %142 = arith.addf %137, %141 : vector<16x8xf32>
    %143 = tpu.reciprocal %142 {approx = true} : vector<16x8xf32> -> vector<16x8xf32>
    %144 = arith.mulf %140, %143 : vector<16x8xf32>
    %cst_70 = arith.constant 2.000000e+01 : f32
    %145 = vector.broadcast %cst_70 : f32 to vector<16x8xf32>
    %146 = arith.cmpf ogt, %131, %145 : vector<16x8xf32>
    %147 = arith.select %146, %131, %144 : vector<16x8xi1>, vector<16x8xf32>
    %148 = arith.addf %147, %2 : vector<16x8xf32>
    %149 = arith.truncf %148 : vector<16x8xf32> to vector<16x8xbf16>
    %c0_71 = arith.constant 0 : index
    %c0_72 = arith.constant 0 : index
    %c0_73 = arith.constant 0 : index
    %150 = vector.load %arg13[%c0_71, %c0_72, %c0_73] : memref<1x16x8xbf16, #tpu.memory_space<vmem>>, vector<1x16x8xbf16>
    %151 = vector.shape_cast %150 : vector<1x16x8xbf16> to vector<16x8xbf16>
    %152 = vector.shape_cast %149 : vector<16x8xbf16> to vector<1x16x8xbf16>
    tpu.vector_store %arg13[%c0_71, %c0_72, %c0_73], %152 {strides = array<i32>} : memref<1x16x8xbf16, #tpu.memory_space<vmem>>, vector<1x16x8xbf16>,
    return
  }
  func.func @transform_0(%arg0: i32, %arg1: i32) -> (i32, i32, i32) {
    %c0_i32 = arith.constant 0 : i32
    %c0_i32_0 = arith.constant 0 : i32
    return %arg0, %arg1, %c0_i32 : i32, i32, i32
  }
  func.func @transform_1(%arg0: i32, %arg1: i32) -> (i32, i32, i32, i32) {
    %c0_i32 = arith.constant 0 : i32
    %c0_i32_0 = arith.constant 0 : i32
    %c0_i32_1 = arith.constant 0 : i32
    return %arg0, %arg1, %c0_i32, %c0_i32_0 : i32, i32, i32, i32
  }
  func.func @transform_2(%arg0: i32, %arg1: i32) -> (i32, i32, i32) {
    %c0_i32 = arith.constant 0 : i32
    %c0_i32_0 = arith.constant 0 : i32
    %c0_i32_1 = arith.constant 0 : i32
    return %arg0, %c0_i32, %c0_i32_0 : i32, i32, i32
  }
  func.func @transform_3(%arg0: i32, %arg1: i32) -> (i32, i32, i32) {
    %c0_i32 = arith.constant 0 : i32
    %c0_i32_0 = arith.constant 0 : i32
    %c0_i32_1 = arith.constant 0 : i32
    %c0_i32_2 = arith.constant 0 : i32
    return %c0_i32, %c0_i32_0, %c0_i32_1 : i32, i32, i32
  }
  func.func @transform_4(%arg0: i32, %arg1: i32) -> (i32, i32) {
    %c0_i32 = arith.constant 0 : i32
    %c0_i32_0 = arith.constant 0 : i32
    %c0_i32_1 = arith.constant 0 : i32
    return %c0_i32, %c0_i32_0 : i32, i32
  }
  func.func @transform_5(%arg0: i32, %arg1: i32) -> (i32, i32) {
    %c0_i32 = arith.constant 0 : i32
    %c0_i32_0 = arith.constant 0 : i32
    %c0_i32_1 = arith.constant 0 : i32
    return %c0_i32, %c0_i32_0 : i32, i32
  }
  func.func @transform_6(%arg0: i32, %arg1: i32) -> (i32, i32) {
    %c0_i32 = arith.constant 0 : i32
    %c0_i32_0 = arith.constant 0 : i32
    %c0_i32_1 = arith.constant 0 : i32
    return %c0_i32, %c0_i32_0 : i32, i32
  }
  func.func @transform_7(%arg0: i32, %arg1: i32) -> (i32, i32, i32) {
    %c0_i32 = arith.constant 0 : i32
    %c0_i32_0 = arith.constant 0 : i32
    %c0_i32_1 = arith.constant 0 : i32
    %c0_i32_2 = arith.constant 0 : i32
    return %c0_i32, %c0_i32_0, %c0_i32_1 : i32, i32, i32
  }
  func.func @transform_8(%arg0: i32, %arg1: i32) -> (i32, i32) {
    %c0_i32 = arith.constant 0 : i32
    %c0_i32_0 = arith.constant 0 : i32
    %c0_i32_1 = arith.constant 0 : i32
    return %c0_i32, %c0_i32_0 : i32, i32
  }
  func.func @transform_9(%arg0: i32, %arg1: i32) -> (i32, i32) {
    %c0_i32 = arith.constant 0 : i32
    %c0_i32_0 = arith.constant 0 : i32
    %c0_i32_1 = arith.constant 0 : i32
    return %c0_i32, %c0_i32_0 : i32, i32
  }
  func.func @transform_10(%arg0: i32, %arg1: i32) -> (i32, i32) {
    %c0_i32 = arith.constant 0 : i32
    %c0_i32_0 = arith.constant 0 : i32
    %c0_i32_1 = arith.constant 0 : i32
    return %c0_i32, %c0_i32_0 : i32, i32
  }
  func.func @transform_11(%arg0: i32, %arg1: i32) -> (i32, i32, i32) {
    %c0_i32 = arith.constant 0 : i32
    %c0_i32_0 = arith.constant 0 : i32
    return %arg0, %arg1, %c0_i32 : i32, i32, i32
  }
}

</mosaic_0001>

<llo_original>
// kernel: tpu_custom_call.1
$region0: #{tpu_custom_call.1}
  #allocation0 [shape = 'u32[]', space=smem, size = 0x4, offset = 0x4, fixed_abs, tag = 'smem constant byte address 0x4 - core index']
  #allocation1 [shape = 'u32[144,128]{1,0:T(1,128)}', space=vmem, size = 0x12000, scoped, tag = 'internal scratch']
  #allocation2 [shape = 'f32[24,8]{1,0:T(8,128)}', space=vmem, size = 0x3000, scoped, tag = 'scratch operand']
  %s0 = inlined_call_operand.vmem [shape: bf16[2,16,8], index: 0, kind: input, shape index: {}]
  %s1 = inlined_call_operand.hbm [shape: bf16[2,1,8,8], index: 1, kind: input, shape index: {}]
  %s2 = inlined_call_operand.vmem [shape: f32[2,1,8], index: 2, kind: input, shape index: {}]
  %s3 = inlined_call_operand.vmem [shape: bf16[3,8,8], index: 3, kind: input, shape index: {}]
  %s4 = inlined_call_operand.vmem [shape: f32[1,8], index: 4, kind: input, shape index: {}]
  %s5 = inlined_call_operand.vmem [shape: f32[1,8], index: 5, kind: input, shape index: {}]
  %s6 = inlined_call_operand.vmem [shape: f32[1,8], index: 6, kind: input, shape index: {}]
  %s7 = inlined_call_operand.vmem [shape: bf16[3,8,8], index: 7, kind: input, shape index: {}]
  %s8 = inlined_call_operand.vmem [shape: f32[1,8], index: 8, kind: input, shape index: {}]
  %s9 = inlined_call_operand.vmem [shape: f32[1,8], index: 9, kind: input, shape index: {}]
  %s10 = inlined_call_operand.vmem [shape: f32[1,8], index: 10, kind: input, shape index: {}]
  %s11 = inlined_call_operand.vmem [shape: bf16[2,16,8], index: 11, kind: output, shape index: {}]
  %s12 = sld [smem:[#allocation0]]
  $region81: #{tpu_custom_call.1} parent=0
    _
  %s14 = ssub.s32 1, %s12
  %s15 = scalar_select 0, %s14, %s12
  $region1: #{tpu_custom_call.1} parent=0
    #allocation3 [shape = 'u8[4096]{0}', space=vmem, size = 0x1000, scoped, tag = 'input window, operand 1']
    #allocation4 [shape = 's32[2]{0}', space=sflag, size = 0x8, scoped, tag = 'scoped memory for tpu_custom_call.1']
    %16 = vsyncpa [#allocation4], 0
    %s17 = scalar_lea.sflag [#allocation4], 1
    %18 = vsyncpa %s17, 0
    loop: start=0, step=1, limit=4
    $region2: #{tpu_custom_call.1} parent=1 // loop_pre_header
      _
    $region3: #{tpu_custom_call.1} parent=1 // loop_header
      %s20 = sphi 0, %s24
      %p21 = scmp.ge.s32.totalorder %s20, 4
      %s27 = sphi 0, %s39
      %s28 = sphi 0, %s35
      %s29 = sphi 0, %s27
      %s30 = sphi 0, %s28
      %s31 = sphi 0, %s29
      %s32 = sphi 0, %s30
      %s44 = sphi 0, %s46
      %s47 = sphi 0, %s44
      %s48 = sphi 0, %s47
      %s64 = sphi 0, %s48
      %s72 = sphi 0, %s74
      %s75 = sphi 0, %s72
      %s76 = sphi 0, %s75
      %s92 = sphi 0, %s76
      %s98 = sphi 0, %s100
      %s101 = sphi 0, %s98
      %s102 = sphi 0, %s101
      %s118 = sphi 0, %s102
      %s122 = sphi 0, %s122
      %s124 = sphi 0, %s122
      %s125 = sphi 0, %s124
      %s139 = sphi 0, %s125
      %s143 = sphi 0, %s143
      %s145 = sphi 0, %s143
      %s146 = sphi 0, %s145
      %s160 = sphi 0, %s146
      %s164 = sphi 0, %s164
      %s166 = sphi 0, %s164
      %s167 = sphi 0, %s166
      %s181 = sphi 0, %s167
      %s185 = sphi 0, %s185
      %s187 = sphi 0, %s185
      %s188 = sphi 0, %s187
      %s202 = sphi 0, %s188
      %s206 = sphi 0, %s206
      %s208 = sphi 0, %s206
      %s209 = sphi 0, %s208
      %s223 = sphi 0, %s209
      %s227 = sphi 0, %s227
      %s229 = sphi 0, %s227
      %s230 = sphi 0, %s229
      %s244 = sphi 0, %s230
      %s248 = sphi 0, %s248
      %s250 = sphi 0, %s248
      %s251 = sphi 0, %s250
      %s265 = sphi 0, %s251
      %s269 = sphi 0, %s269
      %s271 = sphi 0, %s269
      %s272 = sphi 0, %s271
      %s286 = sphi 0, %s272
      %s294 = sphi 0, %s296
      %s297 = sphi 0, %s294
      %s298 = sphi 0, %s297
      %s314 = sphi 0, %s298
    $region4: #{tpu_custom_call.1} parent=1 // loop_header_branch
      %23 = sbr.rel (%p21) target = $region8
    $region5: #{tpu_custom_call.1} parent=1 // loop_body
      %s25 = ssub.s32 %s20, 1
      %s26 = ssub.s32 %s20, 2
      %s33 = sadd.s32 1, %s28
      %p34 = scmp.ge.s32.totalorder %s33, 1
      %s35 = scalar_select %p34, 0, %s33
      %s36 = sadd.s32 1, %s27
      %s37 = scalar_select %p34, %s36, %s27
      %p38 = scmp.ge.s32.totalorder %s37, 2
      %s39 = scalar_select %p38, 0, %s37
      %s40 = ssub.s32 %s27, %s39
      %s41 = ssub.s32 %s28, %s35
      %s42 = sor.u32 %s40, %s41
      %p43 = scmp.eq.s32.totalorder %s42, 0
      %s45 = sadd.s32 %s44, 1
      %s46 = scalar_select %p43, %s44, %s45
      %p49 = pneg %p43
      %p50 = scmp.eq.s32.totalorder %s20, 1
      %p51 = por %p49, %p50
      %p52 = scmp.ne.s32.totalorder %s44, %s47
      %p53 = scmp.eq.s32.totalorder %s20, 0
      %p54 = por %p52, %p53
      %p55 = scmp.ne.s32.totalorder %s44, %s47
      %p56 = scmp.eq.s32.totalorder %s25, 1
      %p57 = por %p55, %p56
      %p58 = scmp.ne.s32.totalorder %s47, %s48
      %p59 = scmp.eq.s32.totalorder %s25, 0
      %p60 = por %p58, %p59
      %p61 = scmp.ne.s32.totalorder %s47, %s48
      %p62 = scmp.eq.s32.totalorder %s26, 1
      %p63 = por %p61, %p62
      %p65 = scmp.ne.s32.totalorder %s48, %s64
      %p66 = scmp.eq.s32.totalorder %s26, 0
      %p67 = por %p65, %p66
      %s68 = ssub.s32 %s27, %s39
      %s69 = ssub.s32 %s28, %s35
      %s70 = sor.u32 %s68, %s69
      %p71 = scmp.eq.s32.totalorder %s70, 0
      %s73 = sadd.s32 %s72, 1
      %s74 = scalar_select %p71, %s72, %s73
      %p77 = pneg %p71
      %p78 = scmp.eq.s32.totalorder %s20, 1
      %p79 = por %p77, %p78
      %p80 = scmp.ne.s32.totalorder %s72, %s75
      %p81 = scmp.eq.s32.totalorder %s20, 0
      %p82 = por %p80, %p81
      %p83 = scmp.ne.s32.totalorder %s72, %s75
      %p84 = scmp.eq.s32.totalorder %s25, 1
      %p85 = por %p83, %p84
      %p86 = scmp.ne.s32.totalorder %s75, %s76
      %p87 = scmp.eq.s32.totalorder %s25, 0
      %p88 = por %p86, %p87
      %p89 = scmp.ne.s32.totalorder %s75, %s76
      %p90 = scmp.eq.s32.totalorder %s26, 1
      %p91 = por %p89, %p90
      %p93 = scmp.ne.s32.totalorder %s76, %s92
      %p94 = scmp.eq.s32.totalorder %s26, 0
      %p95 = por %p93, %p94
      %s96 = ssub.s32 %s27, %s39
      %p97 = scmp.eq.s32.totalorder %s96, 0
      %s99 = sadd.s32 %s98, 1
      %s100 = scalar_select %p97, %s98, %s99
      %p103 = pneg %p97
      %p104 = scmp.eq.s32.totalorder %s20, 1
      %p105 = por %p103, %p104
      %p106 = scmp.ne.s32.totalorder %s98, %s101
      %p107 = scmp.eq.s32.totalorder %s20, 0
      %p108 = por %p106, %p107
      %p109 = scmp.ne.s32.totalorder %s98, %s101
      %p110 = scmp.eq.s32.totalorder %s25, 1
      %p111 = por %p109, %p110
      %p112 = scmp.ne.s32.totalorder %s101, %s102
      %p113 = scmp.eq.s32.totalorder %s25, 0
      %p114 = por %p112, %p113
      %p115 = scmp.ne.s32.totalorder %s101, %s102
      %p116 = scmp.eq.s32.totalorder %s26, 1
      %p117 = por %p115, %p116
      %p119 = scmp.ne.s32.totalorder %s102, %s118
      %p120 = scmp.eq.s32.totalorder %s26, 0
      %p121 = por %p119, %p120
      %s123 = sadd.s32 %s122, 1
      %p126 = scmp.eq.s32.totalorder %s20, 1
      %p127 = scmp.ne.s32.totalorder %s122, %s124
      %p128 = scmp.eq.s32.totalorder %s20, 0
      %p129 = por %p127, %p128
      %p130 = scmp.ne.s32.totalorder %s122, %s124
      %p131 = scmp.eq.s32.totalorder %s25, 1
      %p132 = por %p130, %p131
      %p133 = scmp.ne.s32.totalorder %s124, %s125
      %p134 = scmp.eq.s32.totalorder %s25, 0
      %p135 = por %p133, %p134
      %p136 = scmp.ne.s32.totalorder %s124, %s125
      %p137 = scmp.eq.s32.totalorder %s26, 1
      %p138 = por %p136, %p137
      %p140 = scmp.ne.s32.totalorder %s125, %s139
      %p141 = scmp.eq.s32.totalorder %s26, 0
      %p142 = por %p140, %p141
      %s144 = sadd.s32 %s143, 1
      %p147 = scmp.eq.s32.totalorder %s20, 1
      %p148 = scmp.ne.s32.totalorder %s143, %s145
      %p149 = scmp.eq.s32.totalorder %s20, 0
      %p150 = por %p148, %p149
      %p151 = scmp.ne.s32.totalorder %s143, %s145
      %p152 = scmp.eq.s32.totalorder %s25, 1
      %p153 = por %p151, %p152
      %p154 = scmp.ne.s32.totalorder %s145, %s146
      %p155 = scmp.eq.s32.totalorder %s25, 0
      %p156 = por %p154, %p155
      %p157 = scmp.ne.s32.totalorder %s145, %s146
      %p158 = scmp.eq.s32.totalorder %s26, 1
      %p159 = por %p157, %p158
      %p161 = scmp.ne.s32.totalorder %s146, %s160
      %p162 = scmp.eq.s32.totalorder %s26, 0
      %p163 = por %p161, %p162
      %s165 = sadd.s32 %s164, 1
      %p168 = scmp.eq.s32.totalorder %s20, 1
      %p169 = scmp.ne.s32.totalorder %s164, %s166
      %p170 = scmp.eq.s32.totalorder %s20, 0
      %p171 = por %p169, %p170
      %p172 = scmp.ne.s32.totalorder %s164, %s166
      %p173 = scmp.eq.s32.totalorder %s25, 1
      %p174 = por %p172, %p173
      %p175 = scmp.ne.s32.totalorder %s166, %s167
      %p176 = scmp.eq.s32.totalorder %s25, 0
      %p177 = por %p175, %p176
      %p178 = scmp.ne.s32.totalorder %s166, %s167
      %p179 = scmp.eq.s32.totalorder %s26, 1
      %p180 = por %p178, %p179
      %p182 = scmp.ne.s32.totalorder %s167, %s181
      %p183 = scmp.eq.s32.totalorder %s26, 0
      %p184 = por %p182, %p183
      %s186 = sadd.s32 %s185, 1
      %p189 = scmp.eq.s32.totalorder %s20, 1
      %p190 = scmp.ne.s32.totalorder %s185, %s187
      %p191 = scmp.eq.s32.totalorder %s20, 0
      %p192 = por %p190, %p191
      %p193 = scmp.ne.s32.totalorder %s185, %s187
      %p194 = scmp.eq.s32.totalorder %s25, 1
      %p195 = por %p193, %p194
      %p196 = scmp.ne.s32.totalorder %s187, %s188
      %p197 = scmp.eq.s32.totalorder %s25, 0
      %p198 = por %p196, %p197
      %p199 = scmp.ne.s32.totalorder %s187, %s188
      %p200 = scmp.eq.s32.totalorder %s26, 1
      %p201 = por %p199, %p200
      %p203 = scmp.ne.s32.totalorder %s188, %s202
      %p204 = scmp.eq.s32.totalorder %s26, 0
      %p205 = por %p203, %p204
      %s207 = sadd.s32 %s206, 1
      %p210 = scmp.eq.s32.totalorder %s20, 1
      %p211 = scmp.ne.s32.totalorder %s206, %s208
      %p212 = scmp.eq.s32.totalorder %s20, 0
      %p213 = por %p211, %p212
      %p214 = scmp.ne.s32.totalorder %s206, %s208
      %p215 = scmp.eq.s32.totalorder %s25, 1
      %p216 = por %p214, %p215
      %p217 = scmp.ne.s32.totalorder %s208, %s209
      %p218 = scmp.eq.s32.totalorder %s25, 0
      %p219 = por %p217, %p218
      %p220 = scmp.ne.s32.totalorder %s208, %s209
      %p221 = scmp.eq.s32.totalorder %s26, 1
      %p222 = por %p220, %p221
      %p224 = scmp.ne.s32.totalorder %s209, %s223
      %p225 = scmp.eq.s32.totalorder %s26, 0
      %p226 = por %p224, %p225
      %s228 = sadd.s32 %s227, 1
      %p231 = scmp.eq.s32.totalorder %s20, 1
      %p232 = scmp.ne.s32.totalorder %s227, %s229
      %p233 = scmp.eq.s32.totalorder %s20, 0
      %p234 = por %p232, %p233
      %p235 = scmp.ne.s32.totalorder %s227, %s229
      %p236 = scmp.eq.s32.totalorder %s25, 1
      %p237 = por %p235, %p236
      %p238 = scmp.ne.s32.totalorder %s229, %s230
      %p239 = scmp.eq.s32.totalorder %s25, 0
      %p240 = por %p238, %p239
      %p241 = scmp.ne.s32.totalorder %s229, %s230
      %p242 = scmp.eq.s32.totalorder %s26, 1
      %p243 = por %p241, %p242
      %p245 = scmp.ne.s32.totalorder %s230, %s244
      %p246 = scmp.eq.s32.totalorder %s26, 0
      %p247 = por %p245, %p246
      %s249 = sadd.s32 %s248, 1
      %p252 = scmp.eq.s32.totalorder %s20, 1
      %p253 = scmp.ne.s32.totalorder %s248, %s250
      %p254 = scmp.eq.s32.totalorder %s20, 0
      %p255 = por %p253, %p254
      %p256 = scmp.ne.s32.totalorder %s248, %s250
      %p257 = scmp.eq.s32.totalorder %s25, 1
      %p258 = por %p256, %p257
      %p259 = scmp.ne.s32.totalorder %s250, %s251
      %p260 = scmp.eq.s32.totalorder %s25, 0
      %p261 = por %p259, %p260
      %p262 = scmp.ne.s32.totalorder %s250, %s251
      %p263 = scmp.eq.s32.totalorder %s26, 1
      %p264 = por %p262, %p263
      %p266 = scmp.ne.s32.totalorder %s251, %s265
      %p267 = scmp.eq.s32.totalorder %s26, 0
      %p268 = por %p266, %p267
      %s270 = sadd.s32 %s269, 1
      %p273 = scmp.eq.s32.totalorder %s20, 1
      %p274 = scmp.ne.s32.totalorder %s269, %s271
      %p275 = scmp.eq.s32.totalorder %s20, 0
      %p276 = por %p274, %p275
      %p277 = scmp.ne.s32.totalorder %s269, %s271
      %p278 = scmp.eq.s32.totalorder %s25, 1
      %p279 = por %p277, %p278
      %p280 = scmp.ne.s32.totalorder %s271, %s272
      %p281 = scmp.eq.s32.totalorder %s25, 0
      %p282 = por %p280, %p281
      %p283 = scmp.ne.s32.totalorder %s271, %s272
      %p284 = scmp.eq.s32.totalorder %s26, 1
      %p285 = por %p283, %p284
      %p287 = scmp.ne.s32.totalorder %s272, %s286
      %p288 = scmp.eq.s32.totalorder %s26, 0
      %p289 = por %p287, %p288
      %s290 = ssub.s32 %s27, %s39
      %s291 = ssub.s32 %s28, %s35
      %s292 = sor.u32 %s290, %s291
      %p293 = scmp.eq.s32.totalorder %s292, 0
      %s295 = sadd.s32 %s294, 1
      %s296 = scalar_select %p293, %s294, %s295
      %p299 = pneg %p293
      %p300 = scmp.eq.s32.totalorder %s20, 1
      %p301 = por %p299, %p300
      %p302 = scmp.ne.s32.totalorder %s294, %s297
      %p303 = scmp.eq.s32.totalorder %s20, 0
      %p304 = por %p302, %p303
      %p305 = scmp.ne.s32.totalorder %s294, %s297
      %p306 = scmp.eq.s32.totalorder %s25, 1
      %p307 = por %p305, %p306
      %p308 = scmp.ne.s32.totalorder %s297, %s298
      %p309 = scmp.eq.s32.totalorder %s25, 0
      %p310 = por %p308, %p309
      %p311 = scmp.ne.s32.totalorder %s297, %s298
      %p312 = scmp.eq.s32.totalorder %s26, 1
      %p313 = por %p311, %p312
      %p315 = scmp.ne.s32.totalorder %s298, %s314
      %p316 = scmp.eq.s32.totalorder %s26, 0
      %p317 = por %p315, %p316
      %p318 = scmp.le.s32.totalorder 1, %s20
      %p319 = scmp.lt.s32.totalorder %s20, 3
      %p320 = pnand %p318, %p319
      %p321 = pneg %p320
      // Predicated region
      $region9: #{tpu_custom_call.1} parent=5 // pred_check
        _
      $region10: #{tpu_custom_call.1} parent=5 // pred_check_branch
        %323 = sbr.rel (%p320) target = $region12
      $region11: #{tpu_custom_call.1} parent=5 // pred_region
        %s324 = ssub.s32 %s20, 1
        // Predicated region
        $region13: #{tpu_custom_call.1} parent=11 // pred_check
          %p325 = pneg %p135
        $region14: #{tpu_custom_call.1} parent=11 // pred_check_branch
          %327 = sbr.rel (%p325) target = $region16
        $region15: #{tpu_custom_call.1} parent=11 // pred_region
          _
        $region16: #{tpu_custom_call.1} parent=11 // pred_fallthru
          _
        // Predicated region
        $region17: #{tpu_custom_call.1} parent=11 // pred_check
          %p328 = pneg %p156
        $region18: #{tpu_custom_call.1} parent=11 // pred_check_branch
          %330 = sbr.rel (%p328) target = $region20
        $region19: #{tpu_custom_call.1} parent=11 // pred_region
          _
        $region20: #{tpu_custom_call.1} parent=11 // pred_fallthru
          _
        // Predicated region
        $region21: #{tpu_custom_call.1} parent=11 // pred_check
          %p331 = pneg %p177
        $region22: #{tpu_custom_call.1} parent=11 // pred_check_branch
          %333 = sbr.rel (%p331) target = $region24
        $region23: #{tpu_custom_call.1} parent=11 // pred_region
          _
        $region24: #{tpu_custom_call.1} parent=11 // pred_fallthru
          _
        // Predicated region
        $region25: #{tpu_custom_call.1} parent=11 // pred_check
          %p334 = pneg %p198
        $region26: #{tpu_custom_call.1} parent=11 // pred_check_branch
          %336 = sbr.rel (%p334) target = $region28
        $region27: #{tpu_custom_call.1} parent=11 // pred_region
          _
        $region28: #{tpu_custom_call.1} parent=11 // pred_fallthru
          _
        // Predicated region
        $region29: #{tpu_custom_call.1} parent=11 // pred_check
          %p337 = pneg %p219
        $region30: #{tpu_custom_call.1} parent=11 // pred_check_branch
          %339 = sbr.rel (%p337) target = $region32
        $region31: #{tpu_custom_call.1} parent=11 // pred_region
          _
        $region32: #{tpu_custom_call.1} parent=11 // pred_fallthru
          _
        // Predicated region
        $region33: #{tpu_custom_call.1} parent=11 // pred_check
          %p340 = pneg %p240
        $region34: #{tpu_custom_call.1} parent=11 // pred_check_branch
          %342 = sbr.rel (%p340) target = $region36
        $region35: #{tpu_custom_call.1} parent=11 // pred_region
          _
        $region36: #{tpu_custom_call.1} parent=11 // pred_fallthru
          _
        // Predicated region
        $region37: #{tpu_custom_call.1} parent=11 // pred_check
          %p343 = pneg %p261
        $region38: #{tpu_custom_call.1} parent=11 // pred_check_branch
          %345 = sbr.rel (%p343) target = $region40
        $region39: #{tpu_custom_call.1} parent=11 // pred_region
          _
        $region40: #{tpu_custom_call.1} parent=11 // pred_fallthru
          _
        // Predicated region
        $region41: #{tpu_custom_call.1} parent=11 // pred_check
          %p346 = pneg %p282
        $region42: #{tpu_custom_call.1} parent=11 // pred_check_branch
          %348 = sbr.rel (%p346) target = $region44
        $region43: #{tpu_custom_call.1} parent=11 // pred_region
          _
        $region44: #{tpu_custom_call.1} parent=11 // pred_fallthru
          _
      $region12: #{tpu_custom_call.1} parent=5 // pred_fallthru
        _
      %p349 = scmp.lt.s32.totalorder %s20, 2
      // Predicated region
      $region45: #{tpu_custom_call.1} parent=5 // pred_check
        %p350 = pneg %p349
      $region46: #{tpu_custom_call.1} parent=5 // pred_check_branch
        %352 = sbr.rel (%p350) target = $region48
      $region47: #{tpu_custom_call.1} parent=5 // pred_region
        // Predicated region
        $region49: #{tpu_custom_call.1} parent=47 // pred_check
          %p353 = pneg %p54
        $region50: #{tpu_custom_call.1} parent=47 // pred_check_branch
          %355 = sbr.rel (%p353) target = $region52
        $region51: #{tpu_custom_call.1} parent=47 // pred_region
          %s356 = smul.u32 2, %s28
          %p357 = scmp.lt.s32.totalorder %s27, 1
          %s358 = scalar_select %p357, %s27, 1
          %p359 = scmp.lt.s32.totalorder %s356, 1
          %s360 = scalar_select %p359, %s356, 1
          %s361 = smul.addr %s358, 2
          %s362 = sadd.s32 %s360, %s361
          %s363 = smul.addr %s362, 4
          %s364 = scalar_lea.vmem %s0, %s363
          %s365 = smul.u32 2, %s28
        $region52: #{tpu_custom_call.1} parent=47 // pred_fallthru
          _
        // Predicated region
        $region53: #{tpu_custom_call.1} parent=47 // pred_check
          %p366 = pneg %p82
        $region54: #{tpu_custom_call.1} parent=47 // pred_check_branch
          %368 = sbr.rel (%p366) target = $region56
        $region55: #{tpu_custom_call.1} parent=47 // pred_region
          %s369 = sand.u32 %s72, 1
          %s370 = scalar_lea.sflag [#allocation4], %s369
          %s371 = sand.u32 %s72, 1
          %s372 = smul.addr %s371, 4
          %s373 = scalar_lea.vmem [#allocation3], %s372
          %s375 = ssub.s32 64, 64
          %376 = vsyncadd %s370, %s375
          %s377 = sadd.s32 %s28, %s27
          %s378 = smul.addr %s377, 64
          %s379 = scalar_lea.hbm %s1, %s378
          %s381 = sshll.u32 %s373, 4
          %s382 = int_to_ptr.vmem [resolvable:$true] %s381
          %384 = dma.hbm_to_vmem [thread:$0]  %s379, 64, %s382, %s370
        $region56: #{tpu_custom_call.1} parent=47 // pred_fallthru
          _
        // Predicated region
        $region57: #{tpu_custom_call.1} parent=47 // pred_check
          %p385 = pneg %p108
        $region58: #{tpu_custom_call.1} parent=47 // pred_check_branch
          %387 = sbr.rel (%p385) target = $region60
        $region59: #{tpu_custom_call.1} parent=47 // pred_region
          %p388 = scmp.lt.s32.totalorder %s27, 1
          %s389 = scalar_select %p388, %s27, 1
          %s390 = scalar_lea.vmem %s2, %s389
        $region60: #{tpu_custom_call.1} parent=47 // pred_fallthru
          _
      $region48: #{tpu_custom_call.1} parent=5 // pred_fallthru
        _
      %p391 = scmp.le.s32.totalorder 1, %s20
      %p392 = scmp.lt.s32.totalorder %s20, 3
      %p393 = pnand %p391, %p392
      %p394 = pneg %p393
      // Predicated region
      $region61: #{tpu_custom_call.1} parent=5 // pred_check
        _
      $region62: #{tpu_custom_call.1} parent=5 // pred_check_branch
        %396 = sbr.rel (%p393) target = $region64
      $region63: #{tpu_custom_call.1} parent=5 // pred_region
        %s397 = ssub.s32 %s20, 1
        %s398 = sand.u32 %s75, 1
        %s399 = scalar_lea.sflag [#allocation4], %s398
        %s400 = sand.u32 %s75, 1
        %s401 = smul.addr %s400, 4
        %s402 = scalar_lea.vmem [#allocation3], %s401
        // Predicated region
        $region65: #{tpu_custom_call.1} parent=63 // pred_check
          %p403 = pneg %p88
        $region66: #{tpu_custom_call.1} parent=63 // pred_check_branch
          %405 = sbr.rel (%p403) target = $region68
        $region67: #{tpu_custom_call.1} parent=63 // pred_region
          %406 = dma.done %s399, 64
        $region68: #{tpu_custom_call.1} parent=63 // pred_fallthru
          _
        %s407 = smul.u32 2, %s30
        %p408 = scmp.lt.s32.totalorder %s29, 1
        %s409 = scalar_select %p408, %s29, 1
        %p410 = scmp.lt.s32.totalorder %s407, 1
        %s411 = scalar_select %p410, %s407, 1
        %s412 = smul.addr %s409, 2
        %s413 = sadd.s32 %s411, %s412
        %s414 = smul.addr %s413, 4
        %s415 = scalar_lea.vmem %s0, %s414
        %p416 = pneg %p60
        %p417 = pneg %p57
        %s418 = sand.u32 %s75, 1
        %s419 = scalar_lea.sflag [#allocation4], %s418
        %s420 = sand.u32 %s75, 1
        %s421 = smul.addr %s420, 4
        %s422 = scalar_lea.vmem [#allocation3], %s421
        %p423 = pneg %p88
        %p424 = pneg %p85
        %p425 = scmp.lt.s32.totalorder %s29, 1
        %s426 = scalar_select %p425, %s29, 1
        %s427 = scalar_lea.vmem %s2, %s426
        %p428 = pneg %p114
        %p429 = pneg %p111
        %p430 = pneg %p135
        %p431 = pneg %p132
        %p432 = pneg %p156
        %p433 = pneg %p153
        %p434 = pneg %p177
        %p435 = pneg %p174
        %p436 = pneg %p198
        %p437 = pneg %p195
        %p438 = pneg %p219
        %p439 = pneg %p216
        %p440 = pneg %p240
        %p441 = pneg %p237
        %p442 = pneg %p261
        %p443 = pneg %p258
        %p444 = pneg %p282
        %p445 = pneg %p279
        %p446 = pneg %p310
        %p447 = pneg %p307
        %s448 = smul.u32 2, %s30
        %p449 = scmp.lt.s32.totalorder %s29, 1
        %s450 = scalar_select %p449, %s29, 1
        %p451 = scmp.lt.s32.totalorder %s448, 1
        %s452 = scalar_select %p451, %s448, 1
        %s453 = smul.addr %s450, 2
        %s454 = sadd.s32 %s452, %s453
        %s455 = smul.addr %s454, 4
        %s456 = scalar_lea.vmem %s11, %s455
        %s457 = smul.u32 2, %s30
        %p458 = scmp.lt.s32.totalorder %s29, 1
        %s459 = scalar_select %p458, %s29, 1
        %p460 = scmp.lt.s32.totalorder %s457, 1
        %s461 = scalar_select %p460, %s457, 1
        %s462 = smul.addr %s459, 2
        %s463 = sadd.s32 %s461, %s462
        %s464 = smul.addr %s463, 4
        %s465 = scalar_lea.vmem %s0, %s464
        %s466 = smul.u32 2, %s30
        %p467 = scmp.lt.s32.totalorder %s29, 1
        %s468 = scalar_select %p467, %s29, 1
        %s469 = scalar_lea.vmem %s2, %s468
        %s470 = smul.u32 2, %s30
        %p471 = scmp.lt.s32.totalorder %s29, 1
        %s472 = scalar_select %p471, %s29, 1
        %p473 = scmp.lt.s32.totalorder %s470, 1
        %s474 = scalar_select %p473, %s470, 1
        %s475 = smul.addr %s472, 2
        %s476 = sadd.s32 %s474, %s475
        %s477 = smul.addr %s476, 4
        %s478 = scalar_lea.vmem %s11, %s477
        %s479 = smul.u32 2, %s30
        %v481 = vld [vmem:[%s465] sm:$0xf]
        %v482 = vld [vmem:[%s465 + $0x4] sm:$0xf]
        %v483 = vunpack.c.l.bf16 %v481
        %v484 = vunpack.c.l.bf16 %v482
        %v485 = vld [vmem:[%s402] sm:$0xf]
        %v486 = vunpack.c.l.bf16 %v485
        %vm487 = vcmask 60416
        %488 = vst.msk [vmem:[#allocation2] sm:$0xf] %vm487, %v486
        %vm489 = vcmask 64512
        %490 = vst.msk [vmem:[#allocation2 + $0x4] sm:$0xff] %vm489, %v483
        %491 = vst.msk [vmem:[#allocation2 + $0xc] sm:$0xff] %vm489, %v484
        %vm492 = vcmask 64516
        %493 = vst.msk [vmem:[#allocation2 + $0x10] sm:$0xf0] %vm492, %v486
        %v494 = vld [vmem:[#allocation2] sm:$0xff]
        %v495 = vld [vmem:[#allocation2 + $0x8] sm:$0xff]
        %v496 = vld [vmem:[#allocation2 + $0x10] sm:$0xff]
        %v497 = vrot.slane %v494, 7
        %v498 = vrot.slane %v495, 7
        %v499 = vrot.slane %v496, 7
        %v500 = vlaneseq
        %v501 = vshrl.u32 %v500, 7
        %vm502 = vcmp.lt.s32.totalorder %v501, 1
        %v503 = vsel %vm502, %v498, %v499
        %v504 = vsel %vm502, %v497, %v498
        %v505 = vsel %vm502, %v499, %v497
        %v506 = vrot.slane %v494, 1
        %v507 = vrot.slane %v495, 1
        %v508 = vrot.slane %v496, 1
        %vm509 = vcmp.lt.s32.totalorder %v501, 7
        %v510 = vsel %vm509, %v507, %v508
        %v511 = vsel %vm509, %v506, %v507
        %v512 = vsel %vm509, %v508, %v506
        %v513 = vpack.c.bf16 %v504, %v505
        %v514 = vpack.c.bf16 %v503, %v503
        %v515 = vpack.c.bf16 %v495, %v494
        %v516 = vpack.c.bf16 %v496, %v496
        %v517 = vpack.c.bf16 %v510, %v511
        %v518 = vpack.c.bf16 %v512, %v512
        %v519 = vld [vmem:[%s3] sm:$0xf]
        %s520 = scalar_lea.vmem %s3, 4
        %v521 = vld [vmem:[%s520] sm:$0xf]
        %v523 = vsel %vm489, %v515, 0
        %v526 = vsel %vm489, %v516, 0
        %vm528 = vcmask 1043456
        %v530 = vsel %vm528, %v521, 0
        %532 = vmatprep.subr.bf16.mxu0 0
        %533 = vmatpush1.bf16.msra.mxu0 %v530
        %534 = vmatprep.subr.bf16.mxu0 0
        %535 = vmatpush1.bf16.msra.mxu0 0
        %536 = vmatprep.subr.bf16.mxu0 0
        %537 = vmatpush1.bf16.msra.mxu0 0
        %538 = vmatprep.subr.bf16.mxu0 0
        %539 = vmatpush1.bf16.msra.mxu0 0
        %540 = vmatprep.subr.bf16.mxu0 0
        %541 = vmatpush1.bf16.msra.mxu0 0
        %542 = vmatprep.subr.bf16.mxu0 0
        %543 = vmatpush1.bf16.msra.mxu0 0
        %544 = vmatprep.subr.bf16.mxu0 0
        %545 = vmatpush1.bf16.msra.mxu0 0
        %546 = vmatprep.subr.bf16.mxu0 0
        %547 = vmatpush1.bf16.msra.mxu0 0
        %548 = vmatprep.subr.bf16.mxu0 0
        %549 = vmatpush1.bf16.msra.mxu0 0
        %550 = vmatprep.subr.bf16.mxu0 0
        %551 = vmatpush1.bf16.msra.mxu0 0
        %552 = vmatprep.subr.bf16.mxu0 0
        %553 = vmatpush1.bf16.msra.mxu0 0
        %554 = vmatprep.subr.bf16.mxu0 0
        %555 = vmatpush1.bf16.msra.mxu0 0
        %556 = vmatprep.subr.bf16.mxu0 0
        %557 = vmatpush1.bf16.msra.mxu0 0
        %558 = vmatprep.subr.bf16.mxu0 0
        %559 = vmatpush1.bf16.msra.mxu0 0
        %560 = vmatprep.subr.bf16.mxu0 0
        %561 = vmatpush1.bf16.msra.mxu0 0
        %562 = vmatprep.subr.bf16.mxu0 0
        %563 = vmatpush1.bf16.msra.mxu0 0
        %564 = vmatprep.mubr.bf16.mxu0 0
        %565 = vmatmul.mubr.bf16.gmra.mrb[0].mxu0 %v523
        %v566 = vpop.f32.mrb[0].mxu0
        %v567 = vadd.f32 0.0, %v566
        %v568 = vpop.f32.mrb[0].mxu0
        %v569 = vpop.f32.mrb[0].mxu0
        %v570 = vadd.f32 0.0, %v569
        %v571 = vpop.f32.mrb[0].mxu0
        %572 = vmatprep.mubr.bf16.mxu0 0
        %573 = vmatmul.mubr.bf16.gmra.mrb[0].mxu0 %v526
        %v574 = vpop.f32.mrb[0].mxu0
        %v575 = vadd.f32 0.0, %v574
        %v576 = vpop.f32.mrb[0].mxu0
        %v577 = vpop.f32.mrb[0].mxu0
        %v578 = vpop.f32.mrb[0].mxu0
        %579 = vdwg.mxu0
        %v581 = vsel %vm489, %v513, 0
        %v584 = vsel %vm489, %v514, 0
        %v587 = vsel %vm528, %v519, 0
        %589 = vmatprep.subr.bf16.mxu0 0
        %590 = vmatpush1.bf16.msra.mxu0 %v587
        %591 = vmatprep.subr.bf16.mxu0 0
        %592 = vmatpush1.bf16.msra.mxu0 0
        %593 = vmatprep.subr.bf16.mxu0 0
        %594 = vmatpush1.bf16.msra.mxu0 0
        %595 = vmatprep.subr.bf16.mxu0 0
        %596 = vmatpush1.bf16.msra.mxu0 0
        %597 = vmatprep.subr.bf16.mxu0 0
        %598 = vmatpush1.bf16.msra.mxu0 0
        %599 = vmatprep.subr.bf16.mxu0 0
        %600 = vmatpush1.bf16.msra.mxu0 0
        %601 = vmatprep.subr.bf16.mxu0 0
        %602 = vmatpush1.bf16.msra.mxu0 0
        %603 = vmatprep.subr.bf16.mxu0 0
        %604 = vmatpush1.bf16.msra.mxu0 0
        %605 = vmatprep.subr.bf16.mxu0 0
        %606 = vmatpush1.bf16.msra.mxu0 0
        %607 = vmatprep.subr.bf16.mxu0 0
        %608 = vmatpush1.bf16.msra.mxu0 0
        %609 = vmatprep.subr.bf16.mxu0 0
        %610 = vmatpush1.bf16.msra.mxu0 0
        %611 = vmatprep.subr.bf16.mxu0 0
        %612 = vmatpush1.bf16.msra.mxu0 0
        %613 = vmatprep.subr.bf16.mxu0 0
        %614 = vmatpush1.bf16.msra.mxu0 0
        %615 = vmatprep.subr.bf16.mxu0 0
        %616 = vmatpush1.bf16.msra.mxu0 0
        %617 = vmatprep.subr.bf16.mxu0 0
        %618 = vmatpush1.bf16.msra.mxu0 0
        %619 = vmatprep.subr.bf16.mxu0 0
        %620 = vmatpush1.bf16.msra.mxu0 0
        %621 = vmatprep.mubr.bf16.mxu0 0
        %622 = vmatmul.mubr.bf16.gmra.mrb[0].mxu0 %v581
        %v623 = vpop.f32.mrb[0].mxu0
        %v624 = vadd.f32 %v567, %v623
        %v625 = vpop.f32.mrb[0].mxu0
        %v626 = vpop.f32.mrb[0].mxu0
        %v627 = vadd.f32 %v570, %v626
        %v628 = vpop.f32.mrb[0].mxu0
        %629 = vmatprep.mubr.bf16.mxu0 0
        %630 = vmatmul.mubr.bf16.gmra.mrb[0].mxu0 %v584
        %v631 = vpop.f32.mrb[0].mxu0
        %v632 = vadd.f32 %v575, %v631
        %v633 = vpop.f32.mrb[0].mxu0
        %v634 = vpop.f32.mrb[0].mxu0
        %v635 = vpop.f32.mrb[0].mxu0
        %636 = vdwg.mxu0
        %s637 = scalar_lea.vmem %s3, 8
        %v638 = vld [vmem:[%s637] sm:$0xf]
        %v640 = vsel %vm489, %v517, 0
        %v643 = vsel %vm489, %v518, 0
        %v646 = vsel %vm528, %v638, 0
        %648 = vmatprep.subr.bf16.mxu0 0
        %649 = vmatpush1.bf16.msra.mxu0 %v646
        %650 = vmatprep.subr.bf16.mxu0 0
        %651 = vmatpush1.bf16.msra.mxu0 0
        %652 = vmatprep.subr.bf16.mxu0 0
        %653 = vmatpush1.bf16.msra.mxu0 0
        %654 = vmatprep.subr.bf16.mxu0 0
        %655 = vmatpush1.bf16.msra.mxu0 0
        %656 = vmatprep.subr.bf16.mxu0 0
        %657 = vmatpush1.bf16.msra.mxu0 0
        %658 = vmatprep.subr.bf16.mxu0 0
        %659 = vmatpush1.bf16.msra.mxu0 0
        %660 = vmatprep.subr.bf16.mxu0 0
        %661 = vmatpush1.bf16.msra.mxu0 0
        %662 = vmatprep.subr.bf16.mxu0 0
        %663 = vmatpush1.bf16.msra.mxu0 0
        %664 = vmatprep.subr.bf16.mxu0 0
        %665 = vmatpush1.bf16.msra.mxu0 0
        %666 = vmatprep.subr.bf16.mxu0 0
        %667 = vmatpush1.bf16.msra.mxu0 0
        %668 = vmatprep.subr.bf16.mxu0 0
        %669 = vmatpush1.bf16.msra.mxu0 0
        %670 = vmatprep.subr.bf16.mxu0 0
        %671 = vmatpush1.bf16.msra.mxu0 0
        %672 = vmatprep.subr.bf16.mxu0 0
        %673 = vmatpush1.bf16.msra.mxu0 0
        %674 = vmatprep.subr.bf16.mxu0 0
        %675 = vmatpush1.bf16.msra.mxu0 0
        %676 = vmatprep.subr.bf16.mxu0 0
        %677 = vmatpush1.bf16.msra.mxu0 0
        %678 = vmatprep.subr.bf16.mxu0 0
        %679 = vmatpush1.bf16.msra.mxu0 0
        %680 = vmatprep.mubr.bf16.mxu0 0
        %681 = vmatmul.mubr.bf16.gmra.mrb[0].mxu0 %v640
        %v682 = vpop.f32.mrb[0].mxu0
        %v683 = vadd.f32 0.0, %v682
        %v684 = vpop.f32.mrb[0].mxu0
        %v685 = vpop.f32.mrb[0].mxu0
        %v686 = vadd.f32 0.0, %v685
        %v687 = vpop.f32.mrb[0].mxu0
        %688 = vmatprep.mubr.bf16.mxu0 0
        %689 = vmatmul.mubr.bf16.gmra.mrb[0].mxu0 %v643
        %v690 = vpop.f32.mrb[0].mxu0
        %v691 = vadd.f32 0.0, %v690
        %v692 = vpop.f32.mrb[0].mxu0
        %v693 = vpop.f32.mrb[0].mxu0
        %v694 = vpop.f32.mrb[0].mxu0
        %695 = vdwg.mxu0
        %v696 = vadd.f32 %v624, %v683
        %v697 = vadd.f32 %v627, %v686
        %v698 = vadd.f32 %v632, %v691
        %v699 = vld [vmem:[%s4] sm:$0x1]
        %v701 = vlaneseq
        %v702 = vshrl.u32 %v701, 7
        %v703 = vsub.s32 0, %v702
        %v704 = vrot.slane %v699, %v703
        %v706 = vadd.f32 %v696, %v704
        %v707 = vadd.f32 %v697, %v704
        %v708 = vadd.f32 %v698, %v704
        %v709 = vld [vmem:[%s5] sm:$0x1]
        %v710 = vld [vmem:[%s6] sm:$0x1]
        %v711 = vsel %vm489, %v706, 0.0
        %712 = vadd.xlane.f32.xlu0 %v711
        %v713 = vpop.xlane.xlu0 %712
        %v714 = vsel %vm489, %v707, 0.0
        %715 = vadd.xlane.f32.xlu0 %v714
        %v716 = vpop.xlane.xlu0 %715
        %v717 = vsel %vm489, %v708, 0.0
        %718 = vadd.xlane.f32.xlu0 %v717
        %v719 = vpop.xlane.xlu0 %718
        %v720 = vrcp.pop 8.0
        %v721 = vmul.f32 %v713, %v720
        %v722 = vmul.f32 %v716, %v720
        %v723 = vmul.f32 %v719, %v720
        %v724 = vsub.f32 %v706, %v721
        %v725 = vsub.f32 %v707, %v722
        %v726 = vsub.f32 %v708, %v723
        %v727 = vmul.f32 %v724, %v724
        %v728 = vmul.f32 %v725, %v725
        %v729 = vmul.f32 %v726, %v726
        %v730 = vsel %vm489, %v727, 0.0
        %731 = vadd.xlane.f32.xlu0 %v730
        %v732 = vpop.xlane.xlu0 %731
        %v733 = vsel %vm489, %v728, 0.0
        %734 = vadd.xlane.f32.xlu0 %v733
        %v735 = vpop.xlane.xlu0 %734
        %v736 = vsel %vm489, %v729, 0.0
        %737 = vadd.xlane.f32.xlu0 %v736
        %v738 = vpop.xlane.xlu0 %737
        %v739 = vmul.f32 %v732, %v720
        %v740 = vmul.f32 %v735, %v720
        %v741 = vmul.f32 %v738, %v720
        %v742 = vadd.f32 %v739, 1e-05
        %v743 = vadd.f32 %v740, 1e-05
        %v744 = vadd.f32 %v741, 1e-05
        %v745 = vrsqrt.pop %v742
        %v746 = vrsqrt.pop %v743
        %v747 = vrsqrt.pop %v744
        %v748 = vmul.f32 %v724, %v745
        %v749 = vmul.f32 %v725, %v746
        %v750 = vmul.f32 %v726, %v747
        %v752 = vlaneseq
        %v753 = vshrl.u32 %v752, 7
        %v754 = vsub.s32 0, %v753
        %v755 = vrot.slane %v709, %v754
        %v757 = vmul.f32 %v748, %v755
        %v758 = vmul.f32 %v749, %v755
        %v759 = vmul.f32 %v750, %v755
        %v761 = vlaneseq
        %v762 = vshrl.u32 %v761, 7
        %v763 = vsub.s32 0, %v762
        %v764 = vrot.slane %v710, %v763
        %v766 = vadd.f32 %v757, %v764
        %v767 = vadd.f32 %v758, %v764
        %v768 = vadd.f32 %v759, %v764
        %v769 = vmin.f32 %v766, 20.0
        %v770 = vmin.f32 %v767, 20.0
        %v771 = vmin.f32 %v768, 20.0
        %v772 = vmul.f32 %v769, 1.442695
        %v773 = vpow.pop %v772
        %v774 = vmul.f32 %v770, 1.442695
        %v775 = vpow.pop %v774
        %v776 = vmul.f32 %v771, 1.442695
        %v777 = vpow.pop %v776
        %v778 = vadd.f32 %v773, 1.0
        %v779 = vadd.f32 %v775, 1.0
        %v780 = vadd.f32 %v777, 1.0
        %v781 = vmul.f32 %v778, %v778
        %v782 = vmul.f32 %v779, %v779
        %v783 = vmul.f32 %v780, %v780
        %v784 = vsub.f32 %v781, 1.0
        %v785 = vsub.f32 %v782, 1.0
        %v786 = vsub.f32 %v783, 1.0
        %v787 = vmul.f32 %v766, %v784
        %v788 = vmul.f32 %v767, %v785
        %v789 = vmul.f32 %v768, %v786
        %v790 = vadd.f32 %v781, 1.0
        %v791 = vadd.f32 %v782, 1.0
        %v792 = vadd.f32 %v783, 1.0
        %v793 = vrcp.pop %v790
        %v794 = vrcp.pop %v791
        %v795 = vrcp.pop %v792
        %v796 = vmul.f32 %v787, %v793
        %v797 = vmul.f32 %v788, %v794
        %v798 = vmul.f32 %v789, %v795
        %vm799 = vcmp.gt.f32.partialorder %v766, 20.0
        %vm800 = vcmp.gt.f32.partialorder %v767, 20.0
        %vm801 = vcmp.gt.f32.partialorder %v768, 20.0
        %v802 = vsel %vm799, %v766, %v796
        %v803 = vsel %vm800, %v767, %v797
        %v804 = vsel %vm801, %v768, %v798
        %v805 = vld [vmem:[%s469] sm:$0x1]
        %v807 = vlaneseq
        %v808 = vshrl.u32 %v807, 7
        %v809 = vsub.s32 0, %v808
        %v810 = vrot.slane %v805, %v809
        %v812 = vadd.f32 %v802, %v810
        %v813 = vadd.f32 %v803, %v810
        %v814 = vadd.f32 %v804, %v810
        %v815 = vrot.slane %v812, 7
        %v816 = vrot.slane %v813, 7
        %v817 = vrot.slane %v814, 7
        %v818 = vsel %vm502, %v816, %v817
        %v819 = vsel %vm502, %v815, %v816
        %v820 = vsel %vm502, %v817, %v815
        %v821 = vrot.slane %v812, 1
        %v822 = vrot.slane %v813, 1
        %v823 = vrot.slane %v814, 1
        %v824 = vsel %vm509, %v822, %v823
        %v825 = vsel %vm509, %v821, %v822
        %v826 = vsel %vm509, %v823, %v821
        %v827 = vadd.s32 %v501, 8
        %v828 = vadd.s32 %v501, 16
        %p829 = scmp.eq.s32.totalorder %s30, 0
        %vm830 = vcmp.eq.s32.totalorder %v501, 4
        %vm831 = vcmp.eq.s32.totalorder %v827, 4
        %vm832 = vcmp.eq.s32.totalorder %v828, 4
        %s833 = scalar_select %p829, 1, 0
        %v834 = vstv %s833
        %vm835 = vcmp.eq.s32.totalorder %v834, 1
        %vm836 = vmand %vm835, %vm830
        %vm837 = vmand %vm835, %vm831
        %vm838 = vmand %vm835, %vm832
        %v839 = vsel %vm836, 1, 0
        %v840 = vsel %vm837, 1, 0
        %v841 = vsel %vm838, 1, 0
        %vm842 = vcmp.eq.s32.totalorder %v839, 1
        %vm843 = vcmp.eq.s32.totalorder %v840, 1
        %vm844 = vcmp.eq.s32.totalorder %v841, 1
        %v845 = vsel %vm842, %v812, %v820
        %v846 = vsel %vm843, %v813, %v819
        %v847 = vsel %vm844, %v814, %v818
        %vm848 = vcmp.eq.s32.totalorder %v501, 19
        %vm849 = vcmp.eq.s32.totalorder %v827, 19
        %vm850 = vcmp.eq.s32.totalorder %v828, 19
        %vm851 = vmand %vm835, %vm848
        %vm852 = vmand %vm835, %vm849
        %vm853 = vmand %vm835, %vm850
        %v854 = vsel %vm851, 1, 0
        %v855 = vsel %vm852, 1, 0
        %v856 = vsel %vm853, 1, 0
        %vm857 = vcmp.eq.s32.totalorder %v854, 1
        %vm858 = vcmp.eq.s32.totalorder %v855, 1
        %vm859 = vcmp.eq.s32.totalorder %v856, 1
        %v860 = vsel %vm857, %v812, %v825
        %v861 = vsel %vm858, %v813, %v824
        %v862 = vsel %vm859, %v814, %v826
        %v863 = vpack.c.bf16 %v846, %v845
        %v864 = vpack.c.bf16 %v847, %v847
        %v865 = vpack.c.bf16 %v813, %v812
        %v866 = vpack.c.bf16 %v814, %v814
        %v867 = vpack.c.bf16 %v861, %v860
        %v868 = vpack.c.bf16 %v862, %v862
        %v869 = vld [vmem:[%s7] sm:$0xf]
        %s870 = scalar_lea.vmem %s7, 4
        %v871 = vld [vmem:[%s870] sm:$0xf]
        %v873 = vsel %vm489, %v865, 0
        %v876 = vsel %vm489, %v866, 0
        %v879 = vsel %vm528, %v871, 0
        %881 = vmatprep.subr.bf16.mxu0 0
        %882 = vmatpush1.bf16.msra.mxu0 %v879
        %883 = vmatprep.subr.bf16.mxu0 0
        %884 = vmatpush1.bf16.msra.mxu0 0
        %885 = vmatprep.subr.bf16.mxu0 0
        %886 = vmatpush1.bf16.msra.mxu0 0
        %887 = vmatprep.subr.bf16.mxu0 0
        %888 = vmatpush1.bf16.msra.mxu0 0
        %889 = vmatprep.subr.bf16.mxu0 0
        %890 = vmatpush1.bf16.msra.mxu0 0
        %891 = vmatprep.subr.bf16.mxu0 0
        %892 = vmatpush1.bf16.msra.mxu0 0
        %893 = vmatprep.subr.bf16.mxu0 0
        %894 = vmatpush1.bf16.msra.mxu0 0
        %895 = vmatprep.subr.bf16.mxu0 0
        %896 = vmatpush1.bf16.msra.mxu0 0
        %897 = vmatprep.subr.bf16.mxu0 0
        %898 = vmatpush1.bf16.msra.mxu0 0
        %899 = vmatprep.subr.bf16.mxu0 0
        %900 = vmatpush1.bf16.msra.mxu0 0
        %901 = vmatprep.subr.bf16.mxu0 0
        %902 = vmatpush1.bf16.msra.mxu0 0
        %903 = vmatprep.subr.bf16.mxu0 0
        %904 = vmatpush1.bf16.msra.mxu0 0
        %905 = vmatprep.subr.bf16.mxu0 0
        %906 = vmatpush1.bf16.msra.mxu0 0
        %907 = vmatprep.subr.bf16.mxu0 0
        %908 = vmatpush1.bf16.msra.mxu0 0
        %909 = vmatprep.subr.bf16.mxu0 0
        %910 = vmatpush1.bf16.msra.mxu0 0
        %911 = vmatprep.subr.bf16.mxu0 0
        %912 = vmatpush1.bf16.msra.mxu0 0
        %913 = vmatprep.mubr.bf16.mxu0 0
        %914 = vmatmul.mubr.bf16.gmra.mrb[0].mxu0 %v873
        %v915 = vpop.f32.mrb[0].mxu0
        %v916 = vadd.f32 0.0, %v915
        %v917 = vpop.f32.mrb[0].mxu0
        %v918 = vpop.f32.mrb[0].mxu0
        %v919 = vadd.f32 0.0, %v918
        %v920 = vpop.f32.mrb[0].mxu0
        %921 = vmatprep.mubr.bf16.mxu0 0
        %922 = vmatmul.mubr.bf16.gmra.mrb[0].mxu0 %v876
        %v923 = vpop.f32.mrb[0].mxu0
        %v924 = vadd.f32 0.0, %v923
        %v925 = vpop.f32.mrb[0].mxu0
        %v926 = vpop.f32.mrb[0].mxu0
        %v927 = vpop.f32.mrb[0].mxu0
        %928 = vdwg.mxu0
        %v930 = vsel %vm489, %v863, 0
        %v933 = vsel %vm489, %v864, 0
        %v936 = vsel %vm528, %v869, 0
        %938 = vmatprep.subr.bf16.mxu0 0
        %939 = vmatpush1.bf16.msra.mxu0 %v936
        %940 = vmatprep.subr.bf16.mxu0 0
        %941 = vmatpush1.bf16.msra.mxu0 0
        %942 = vmatprep.subr.bf16.mxu0 0
        %943 = vmatpush1.bf16.msra.mxu0 0
        %944 = vmatprep.subr.bf16.mxu0 0
        %945 = vmatpush1.bf16.msra.mxu0 0
        %946 = vmatprep.subr.bf16.mxu0 0
        %947 = vmatpush1.bf16.msra.mxu0 0
        %948 = vmatprep.subr.bf16.mxu0 0
        %949 = vmatpush1.bf16.msra.mxu0 0
        %950 = vmatprep.subr.bf16.mxu0 0
        %951 = vmatpush1.bf16.msra.mxu0 0
        %952 = vmatprep.subr.bf16.mxu0 0
        %953 = vmatpush1.bf16.msra.mxu0 0
        %954 = vmatprep.subr.bf16.mxu0 0
        %955 = vmatpush1.bf16.msra.mxu0 0
        %956 = vmatprep.subr.bf16.mxu0 0
        %957 = vmatpush1.bf16.msra.mxu0 0
        %958 = vmatprep.subr.bf16.mxu0 0
        %959 = vmatpush1.bf16.msra.mxu0 0
        %960 = vmatprep.subr.bf16.mxu0 0
        %961 = vmatpush1.bf16.msra.mxu0 0
        %962 = vmatprep.subr.bf16.mxu0 0
        %963 = vmatpush1.bf16.msra.mxu0 0
        %964 = vmatprep.subr.bf16.mxu0 0
        %965 = vmatpush1.bf16.msra.mxu0 0
        %966 = vmatprep.subr.bf16.mxu0 0
        %967 = vmatpush1.bf16.msra.mxu0 0
        %968 = vmatprep.subr.bf16.mxu0 0
        %969 = vmatpush1.bf16.msra.mxu0 0
        %970 = vmatprep.mubr.bf16.mxu0 0
        %971 = vmatmul.mubr.bf16.gmra.mrb[0].mxu0 %v930
        %v972 = vpop.f32.mrb[0].mxu0
        %v973 = vadd.f32 %v916, %v972
        %v974 = vpop.f32.mrb[0].mxu0
        %v975 = vpop.f32.mrb[0].mxu0
        %v976 = vadd.f32 %v919, %v975
        %v977 = vpop.f32.mrb[0].mxu0
        %978 = vmatprep.mubr.bf16.mxu0 0
        %979 = vmatmul.mubr.bf16.gmra.mrb[0].mxu0 %v933
        %v980 = vpop.f32.mrb[0].mxu0
        %v981 = vadd.f32 %v924, %v980
        %v982 = vpop.f32.mrb[0].mxu0
        %v983 = vpop.f32.mrb[0].mxu0
        %v984 = vpop.f32.mrb[0].mxu0
        %985 = vdwg.mxu0
        %s986 = scalar_lea.vmem %s7, 8
        %v987 = vld [vmem:[%s986] sm:$0xf]
        %v989 = vsel %vm489, %v867, 0
        %v992 = vsel %vm489, %v868, 0
        %v995 = vsel %vm528, %v987, 0
        %997 = vmatprep.subr.bf16.mxu0 0
        %998 = vmatpush1.bf16.msra.mxu0 %v995
        %999 = vmatprep.subr.bf16.mxu0 0
        %1000 = vmatpush1.bf16.msra.mxu0 0
        %1001 = vmatprep.subr.bf16.mxu0 0
        %1002 = vmatpush1.bf16.msra.mxu0 0
        %1003 = vmatprep.subr.bf16.mxu0 0
        %1004 = vmatpush1.bf16.msra.mxu0 0
        %1005 = vmatprep.subr.bf16.mxu0 0
        %1006 = vmatpush1.bf16.msra.mxu0 0
        %1007 = vmatprep.subr.bf16.mxu0 0
        %1008 = vmatpush1.bf16.msra.mxu0 0
        %1009 = vmatprep.subr.bf16.mxu0 0
        %1010 = vmatpush1.bf16.msra.mxu0 0
        %1011 = vmatprep.subr.bf16.mxu0 0
        %1012 = vmatpush1.bf16.msra.mxu0 0
        %1013 = vmatprep.subr.bf16.mxu0 0
        %1014 = vmatpush1.bf16.msra.mxu0 0
        %1015 = vmatprep.subr.bf16.mxu0 0
        %1016 = vmatpush1.bf16.msra.mxu0 0
        %1017 = vmatprep.subr.bf16.mxu0 0
        %1018 = vmatpush1.bf16.msra.mxu0 0
        %1019 = vmatprep.subr.bf16.mxu0 0
        %1020 = vmatpush1.bf16.msra.mxu0 0
        %1021 = vmatprep.subr.bf16.mxu0 0
        %1022 = vmatpush1.bf16.msra.mxu0 0
        %1023 = vmatprep.subr.bf16.mxu0 0
        %1024 = vmatpush1.bf16.msra.mxu0 0
        %1025 = vmatprep.subr.bf16.mxu0 0
        %1026 = vmatpush1.bf16.msra.mxu0 0
        %1027 = vmatprep.subr.bf16.mxu0 0
        %1028 = vmatpush1.bf16.msra.mxu0 0
        %1029 = vmatprep.mubr.bf16.mxu0 0
        %1030 = vmatmul.mubr.bf16.gmra.mrb[0].mxu0 %v989
        %v1031 = vpop.f32.mrb[0].mxu0
        %v1032 = vadd.f32 0.0, %v1031
        %v1033 = vpop.f32.mrb[0].mxu0
        %v1034 = vpop.f32.mrb[0].mxu0
        %v1035 = vadd.f32 0.0, %v1034
        %v1036 = vpop.f32.mrb[0].mxu0
        %1037 = vmatprep.mubr.bf16.mxu0 0
        %1038 = vmatmul.mubr.bf16.gmra.mrb[0].mxu0 %v992
        %v1039 = vpop.f32.mrb[0].mxu0
        %v1040 = vadd.f32 0.0, %v1039
        %v1041 = vpop.f32.mrb[0].mxu0
        %v1042 = vpop.f32.mrb[0].mxu0
        %v1043 = vpop.f32.mrb[0].mxu0
        %1044 = vdwg.mxu0
        %v1045 = vadd.f32 %v973, %v1032
        %v1046 = vadd.f32 %v976, %v1035
        %v1047 = vadd.f32 %v981, %v1040
        %v1048 = vld [vmem:[%s8] sm:$0x1]
        %v1050 = vlaneseq
        %v1051 = vshrl.u32 %v1050, 7
        %v1052 = vsub.s32 0, %v1051
        %v1053 = vrot.slane %v1048, %v1052
        %v1055 = vadd.f32 %v1045, %v1053
        %v1056 = vadd.f32 %v1046, %v1053
        %v1057 = vadd.f32 %v1047, %v1053
        %v1058 = vld [vmem:[%s9] sm:$0x1]
        %v1059 = vld [vmem:[%s10] sm:$0x1]
        %v1060 = vsel %vm492, %v1055, 0.0
        %1061 = vadd.xlane.f32.xlu0 %v1060
        %v1062 = vpop.xlane.xlu0 %1061
        %v1063 = vsel %vm489, %v1056, 0.0
        %1064 = vadd.xlane.f32.xlu0 %v1063
        %v1065 = vpop.xlane.xlu0 %1064
        %v1066 = vsel %vm487, %v1057, 0.0
        %1067 = vadd.xlane.f32.xlu0 %v1066
        %v1068 = vpop.xlane.xlu0 %1067
        %v1069 = vmul.f32 %v1062, %v720
        %v1070 = vmul.f32 %v1065, %v720
        %v1071 = vmul.f32 %v1068, %v720
        %v1072 = vsub.f32 %v1055, %v1069
        %v1073 = vsub.f32 %v1056, %v1070
        %v1074 = vsub.f32 %v1057, %v1071
        %v1075 = vmul.f32 %v1072, %v1072
        %v1076 = vmul.f32 %v1073, %v1073
        %v1077 = vmul.f32 %v1074, %v1074
        %v1078 = vsel %vm492, %v1075, 0.0
        %1079 = vadd.xlane.f32.xlu0 %v1078
        %v1080 = vpop.xlane.xlu0 %1079
        %v1081 = vsel %vm489, %v1076, 0.0
        %1082 = vadd.xlane.f32.xlu0 %v1081
        %v1083 = vpop.xlane.xlu0 %1082
        %v1084 = vsel %vm487, %v1077, 0.0
        %1085 = vadd.xlane.f32.xlu0 %v1084
        %v1086 = vpop.xlane.xlu0 %1085
        %v1087 = vmul.f32 %v1080, %v720
        %v1088 = vmul.f32 %v1083, %v720
        %v1089 = vmul.f32 %v1086, %v720
        %v1090 = vadd.f32 %v1087, 1e-05
        %v1091 = vadd.f32 %v1088, 1e-05
        %v1092 = vadd.f32 %v1089, 1e-05
        %v1093 = vrsqrt.pop %v1090
        %v1094 = vrsqrt.pop %v1091
        %v1095 = vrsqrt.pop %v1092
        %v1096 = vmul.f32 %v1072, %v1093
        %v1097 = vmul.f32 %v1073, %v1094
        %v1098 = vmul.f32 %v1074, %v1095
        %v1100 = vlaneseq
        %v1101 = vshrl.u32 %v1100, 7
        %v1102 = vsub.s32 0, %v1101
        %v1103 = vrot.slane %v1058, %v1102
        %v1105 = vmul.f32 %v1096, %v1103
        %v1106 = vmul.f32 %v1097, %v1103
        %v1107 = vmul.f32 %v1098, %v1103
        %v1109 = vlaneseq
        %v1110 = vshrl.u32 %v1109, 7
        %v1111 = vsub.s32 0, %v1110
        %v1112 = vrot.slane %v1059, %v1111
        %v1114 = vadd.f32 %v1105, %v1112
        %v1115 = vadd.f32 %v1106, %v1112
        %v1116 = vadd.f32 %v1107, %v1112
        %v1117 = vmin.f32 %v1114, 20.0
        %v1118 = vmin.f32 %v1115, 20.0
        %v1119 = vmin.f32 %v1116, 20.0
        %v1120 = vmul.f32 %v1117, 1.442695
        %v1121 = vpow.pop %v1120
        %v1122 = vmul.f32 %v1118, 1.442695
        %v1123 = vpow.pop %v1122
        %v1124 = vmul.f32 %v1119, 1.442695
        %v1125 = vpow.pop %v1124
        %v1126 = vadd.f32 %v1121, 1.0
        %v1127 = vadd.f32 %v1123, 1.0
        %v1128 = vadd.f32 %v1125, 1.0
        %v1129 = vmul.f32 %v1126, %v1126
        %v1130 = vmul.f32 %v1127, %v1127
        %v1131 = vmul.f32 %v1128, %v1128
        %v1132 = vsub.f32 %v1129, 1.0
        %v1133 = vsub.f32 %v1130, 1.0
        %v1134 = vsub.f32 %v1131, 1.0
        %v1135 = vmul.f32 %v1114, %v1132
        %v1136 = vmul.f32 %v1115, %v1133
        %v1137 = vmul.f32 %v1116, %v1134
        %v1138 = vadd.f32 %v1129, 1.0
        %v1139 = vadd.f32 %v1130, 1.0
        %v1140 = vadd.f32 %v1131, 1.0
        %v1141 = vrcp.pop %v1138
        %v1142 = vrcp.pop %v1139
        %v1143 = vrcp.pop %v1140
        %v1144 = vmul.f32 %v1135, %v1141
        %v1145 = vmul.f32 %v1136, %v1142
        %v1146 = vmul.f32 %v1137, %v1143
        %vm1147 = vcmp.gt.f32.partialorder %v1114, 20.0
        %vm1148 = vcmp.gt.f32.partialorder %v1115, 20.0
        %vm1149 = vcmp.gt.f32.partialorder %v1116, 20.0
        %v1150 = vsel %vm1147, %v1114, %v1144
        %v1151 = vsel %vm1148, %v1115, %v1145
        %v1152 = vsel %vm1149, %v1116, %v1146
        %v1155 = vrot.slane %v483, 4
        %v1156 = vrot.slane %v484, 4
        %v1157 = vsel %vm528, %v1155, %v1156
        %v1161 = vadd.f32 %v1150, %v1155
        %v1162 = vadd.f32 %v1151, %v1157
        %v1163 = vadd.f32 %v1152, %v1156
        %v1164 = vpack.c.bf16 %v1162, %v1161
        %v1165 = vpack.c.bf16 %v1163, %v1163
        %v1168 = vunpack.c.l.b16 %v1164
        %v1169 = vunpack.c.h.b16 %v1164
        %v1170 = vunpack.c.l.b16 %v1165
        %v1171 = vpack.c.b16 %v1168, %v1168
        %v1172 = vpack.c.b16 %v1169, %v1169
        %v1173 = vpack.c.b16 %v1170, %v1170
        %vm1174 = vcmask 1041408
        %vm1175 = vcmask 1045508
        %vm1176 = vmor %vm1174, %vm1175
        %v1177 = vrot.slane %v1171, 6
        %v1178 = vrot.slane %v1177, 4
        %v1179 = vrot.slane %v1172, 6
        %v1180 = vsel %vm1176, %v1178, %v1179
        %v1181 = vrot.slane %v1179, 4
        %v1182 = vrot.slane %v1173, 6
        %v1183 = vsel %vm1176, %v1181, %v1182
        %1186 = vst.msk [vmem:[%s478] sm:$0xf] %vm487, %v1180
        %1187 = vst.msk [vmem:[%s478 + $0x4] sm:$0xf] %vm487, %v1183
        %s1188 = smul.u32 2, %s30
        %p1189 = scmp.lt.s32.totalorder %s29, 1
        %s1190 = scalar_select %p1189, %s29, 1
        %p1191 = scmp.lt.s32.totalorder %s1188, 1
        %s1192 = scalar_select %p1191, %s1188, 1
        %s1193 = smul.addr %s1190, 2
        %s1194 = sadd.s32 %s1192, %s1193
        %s1195 = smul.addr %s1194, 4
        %s1196 = scalar_lea.vmem %s11, %s1195
        // Predicated region
        $region69: #{tpu_custom_call.1} parent=63 // pred_check
          %p1197 = pneg %p307
        $region70: #{tpu_custom_call.1} parent=63 // pred_check_branch
          %1199 = sbr.rel (%p1197) target = $region72
        $region71: #{tpu_custom_call.1} parent=63 // pred_region
          %s1200 = smul.u32 2, %s30
        $region72: #{tpu_custom_call.1} parent=63 // pred_fallthru
          _
      $region64: #{tpu_custom_call.1} parent=5 // pred_fallthru
        _
      %p1201 = scmp.le.s32.totalorder 2, %s20
      // Predicated region
      $region73: #{tpu_custom_call.1} parent=5 // pred_check
        %p1202 = pneg %p1201
      $region74: #{tpu_custom_call.1} parent=5 // pred_check_branch
        %1204 = sbr.rel (%p1202) target = $region76
      $region75: #{tpu_custom_call.1} parent=5 // pred_region
        %s1205 = ssub.s32 %s20, 2
        // Predicated region
        $region77: #{tpu_custom_call.1} parent=75 // pred_check
          %p1206 = pneg %p313
        $region78: #{tpu_custom_call.1} parent=75 // pred_check_branch
          %1208 = sbr.rel (%p1206) target = $region80
        $region79: #{tpu_custom_call.1} parent=75 // pred_region
          %s1209 = smul.u32 2, %s32
          %p1210 = scmp.lt.s32.totalorder %s31, 1
          %s1211 = scalar_select %p1210, %s31, 1
          %p1212 = scmp.lt.s32.totalorder %s1209, 1
          %s1213 = scalar_select %p1212, %s1209, 1
          %s1214 = smul.addr %s1211, 2
          %s1215 = sadd.s32 %s1213, %s1214
          %s1216 = smul.addr %s1215, 4
          %s1217 = scalar_lea.vmem %s11, %s1216
        $region80: #{tpu_custom_call.1} parent=75 // pred_fallthru
          _
      $region76: #{tpu_custom_call.1} parent=5 // pred_fallthru
        _
    $region6: #{tpu_custom_call.1} parent=1 // loop_footer
      %s24 = sadd.s32 1, %s20
    $region7: #{tpu_custom_call.1} parent=1 // loop_footer_branch
      %19 = sbr.rel target = $region3
    $region8: #{tpu_custom_call.1} parent=1 // loop_exit
      _
    %1218 = vsyncpa [#allocation4], 1
    %s1219 = scalar_lea.sflag [#allocation4], 1
    %1220 = vsyncpa %s1219, 1

</llo_original>
